<compile_context>
chip_gen: v6e
topology: v6e:2x2x1
jax: 0.10.0
libtpu: 0.0.40
codegen_flags: <defaults>
</compile_context>

<pallas_src>
import math
import functools
from typing import NamedTuple

import jax
import jax.numpy as jnp
from jax.experimental import pallas as pl
from jax.experimental.pallas import tpu as pltpu

_LANE = 128
_EPS = 1e-5
_MIB = 1024 * 1024


def _round_up(n, m):
    return ((n + m - 1) // m) * m


# --------------------------------------------------------------------------
# Parameter packing (do once, reuse across calls).
# --------------------------------------------------------------------------
class PackedParams(NamedTuple):
    wq: jax.Array     # (din_pad, d_pad)       bf16
    wkv: jax.Array    # (din_pad, 2 * d_pad)   bf16, cols = [K | V]
    wig: jax.Array    # (2*d_pad, 2*d_pad)     bf16, rows = [attn | q], cols = [info | gate]
    slab: jax.Array   # (8, d_pad)             f32: bq, bk, bv, bi, bg, gamma, beta, 0
    d_in: int
    d_in_pad: int
    d_out: int
    d_pad: int


def pack_params(params):
    """Pad / fuse the 12 small parameter arrays once (invariant across calls)."""
    d_in, d_out = params["wq"].shape
    d_pad = _round_up(d_out, _LANE)
    d_in_pad = _round_up(d_in, _LANE)
    cp = d_pad - d_out
    rp = d_in_pad - d_in

    def pad_in(w):    # (d_in, d_out) -> (d_in_pad, d_pad)
        return jnp.pad(w, ((0, rp), (0, cp)))

    def pad_sq(w):    # (d_out, d_out) -> (d_pad, d_pad)
        return jnp.pad(w, ((0, cp), (0, cp)))

    wq = pad_in(params["wq"])
    wkv = jnp.concatenate([pad_in(params["wk"]), pad_in(params["wv"])], axis=1)

    wi, wg = params["wi"], params["wg"]
    wig = jnp.concatenate(
        [jnp.concatenate([pad_sq(wi[:d_out]), pad_sq(wg[:d_out])], axis=1),
         jnp.concatenate([pad_sq(wi[d_out:]), pad_sq(wg[d_out:])], axis=1)],
        axis=0)

    def pad_vec(v):
        return jnp.pad(v.reshape(1, -1), ((0, 0), (0, cp)))

    slab = jnp.concatenate(
        [pad_vec(params[n]) for n in ("bq", "bk", "bv", "bi", "bg", "gamma", "beta")]
        + [jnp.zeros((1, d_pad), jnp.float32)], axis=0)            # (8, d_pad)

    return PackedParams(wq.astype(jnp.bfloat16), wkv.astype(jnp.bfloat16),
                        wig.astype(jnp.bfloat16), slab.astype(jnp.float32),
                        d_in, d_in_pad, d_out, d_pad)


# --------------------------------------------------------------------------
# Kernel
# --------------------------------------------------------------------------
def _up_triangle1_kernel(x_ref, c_ref, wq_ref, wkv_ref, wig_ref, slab_ref,
                         o_ref, q_sc, m_sc, l_sc, acc_sc, *, d_out, scale):
    """One (batch-tile, ctx-tile) grid step.  Projections run in bf16 on the
    MXU with f32 accumulation; softmax / LayerNorm math stays f32 on VPU/EUP.
    The ctx axis uses an online (flash-style) softmax so the full (S, Sc)
    score matrix is never materialized."""
    TB, S, Dinp = x_ref.shape
    _, Sct, _ = c_ref.shape
    Dp = wq_ref.shape[1]
    kv_i = pl.program_id(1)

    # --- first ctx tile: Q projection + online-softmax state init ----------
    @pl.when(kv_i == 0)
    def _():
        x = x_ref[...].astype(jnp.bfloat16).reshape(TB * S, Dinp)
        q = jnp.dot(x, wq_ref[...], preferred_element_type=jnp.float32) \
            + slab_ref[0:1, :]                                        # + bq
        q_sc[...] = q.reshape(TB, S, Dp).astype(jnp.bfloat16)
        m_sc[...] = jnp.full(m_sc.shape, -jnp.inf, m_sc.dtype)
        l_sc[...] = jnp.zeros(l_sc.shape, l_sc.dtype)
        acc_sc[...] = jnp.zeros(acc_sc.shape, acc_sc.dtype)

    # --- fused K|V projection for this ctx tile -----------------------------
    c = c_ref[...].astype(jnp.bfloat16).reshape(TB * Sct, Dinp)
    kv = jnp.dot(c, wkv_ref[...], preferred_element_type=jnp.float32)
    k3 = (kv[:, :Dp] + slab_ref[1:2, :]).astype(jnp.bfloat16).reshape(TB, Sct, Dp)
    v3 = (kv[:, Dp:] + slab_ref[2:3, :]).astype(jnp.bfloat16).reshape(TB, Sct, Dp)

    # --- online softmax over ctx positions -----------------------------------
    s = jnp.einsum('bqd,bkd->bqk', q_sc[...], k3,
                   preferred_element_type=jnp.float32) * scale        # (TB,S,Sct)
    m_new = jnp.maximum(m_sc[...], jnp.max(s, axis=-1, keepdims=True))
    alpha = jnp.exp(m_sc[...] - m_new)
    p = jnp.exp(s - m_new)
    l_sc[...] = alpha * l_sc[...] + jnp.sum(p, axis=-1, keepdims=True)
    acc_sc[...] = alpha * acc_sc[...] + jnp.einsum(
        'bqk,bkd->bqd', p.astype(jnp.bfloat16), v3,
        preferred_element_type=jnp.float32)
    m_sc[...] = m_new

    # --- last ctx tile: AoA gating + LayerNorm + ReLU ------------------------
    @pl.when(kv_i == pl.num_programs(1) - 1)
    def _():
        attn = acc_sc[...] * pl.reciprocal(l_sc[...], approx=True)
        a2 = attn.reshape(TB * S, Dp).astype(jnp.bfloat16)
        q2 = q_sc[...].reshape(TB * S, Dp)
        # fused [info | gate]: two accumulated matmuls, no lane-axis concat.
        ig = (jnp.dot(a2, wig_ref[0:Dp, :], preferred_element_type=jnp.float32)
              + jnp.dot(q2, wig_ref[Dp:, :], preferred_element_type=jnp.float32))
        info = ig[:, :Dp] + slab_ref[3:4, :]
        gate = jax.nn.sigmoid(ig[:, Dp:] + slab_ref[4:5, :])
        x_up = info * gate                      # padded lanes are exactly 0

        # LayerNorm(d_out) + ReLU (dropout = identity in eval mode).
        inv_d = 1.0 / d_out
        mean = jnp.sum(x_up, axis=-1, keepdims=True) * inv_d          # pads add 0
        if d_out != Dp:                          # static: only mask when padded
            col = jax.lax.broadcasted_iota(jnp.int32, x_up.shape, 1)
            cen = jnp.where(col < d_out, x_up - mean, 0.0)
        else:
            cen = x_up - mean
        var = jnp.sum(cen * cen, axis=-1, keepdims=True) * inv_d
        y = cen * jax.lax.rsqrt(var + _EPS)
        y = y * slab_ref[5:6, :] + slab_ref[6:7, :]
        y = jnp.maximum(y, 0.0)
        o_ref[...] = y.reshape(TB, S, Dp).astype(o_ref.dtype)


# --------------------------------------------------------------------------
# Tiling / VMEM budgeting
# --------------------------------------------------------------------------
def _tpu_target():
    """Returns (tensorcores_per_device, physical_vmem_bytes) heuristically."""
    num_tc, vmem = 1, 128 * _MIB
    try:
        kind = jax.devices()[0].device_kind.lower()
    except Exception:
        return num_tc, vmem
    if "v7" in kind:
        return 2, 64 * _MIB           # v7x: 2 TCs, 64 MiB VMEM per TC
    if "v4" in kind or "v5p" in kind:
        return 2, 128 * _MIB          # megacore
    return num_tc, vmem               # v5e / v6e: 1 TC, 128 MiB


def _step_footprint_bytes(tb, S, sct, din_p, d_pad):
    """Rough per-grid-step VMEM footprint: double-buffered I/O tiles,
    single-buffered constants, scratch, and the main f32 intermediates."""
    f32, bf16 = 4, 2
    rq, rk = tb * S, tb * sct
    consts = (din_p * d_pad + din_p * 2 * d_pad + 4 * d_pad * d_pad) * bf16 \
             + 8 * d_pad * f32
    io = 2 * rq * din_p * f32 + 2 * rk * din_p * f32 + 2 * rq * d_pad * f32
    scratch = rq * d_pad * bf16 + 2 * rq * _LANE * f32 + rq * d_pad * f32
    inter = rk * 2 * d_pad * f32 + rq * sct * f32 + rq * 2 * d_pad * f32 \
            + 2 * rq * d_pad * f32
    return consts + io + scratch + inter


def _pick_tiles(B, S, Sc, din_p, d_pad, num_tc, vmem_cap):
    """Largest batch tile (and ctx tile) fitting the per-generation VMEM
    budget.  Only 2-TC chips need >=2 grid points on the parallel batch axis;
    on 1-TC chips the grid is a sequential loop, so take the whole batch."""
    budget = int(vmem_cap * 0.45)
    min_grid_b = 2 if (num_tc >= 2 and B >= 2) else 1
    max_rows = 1024                      # keep TB*S within a few MXU passes

    b_divs = [d for d in range(1, B + 1) if B % d == 0]
    sc_divs = [d for d in range(1, Sc + 1)
               if Sc % d == 0 and (d == Sc or d % 8 == 0)]

    best, best_key = (1, min(sc_divs)), (0, 0)
    for sct in sc_divs:
        for tb in b_divs:
            if B // tb < min_grid_b:
                continue
            if tb * S > max_rows or tb * sct > max_rows:
                continue
            if _step_footprint_bytes(tb, S, sct, din_p, d_pad) > budget:
                continue
            if (tb, sct) > best_key:
                best, best_key = (tb, sct), (tb, sct)
    return best


# --------------------------------------------------------------------------
# Wrapper
# --------------------------------------------------------------------------
def up_triangle1(x, ctx, params):
    """x: (B, S, Din), ctx: (B, Sc, Din) -> (B, S, Dout) in f32.

    `params` may be a raw parameter dict or a PackedParams (preferred: call
    pack_params once and reuse -- the packing is invariant across calls)."""
    packed = params if isinstance(params, PackedParams) else pack_params(params)
    B, S, Din = x.shape
    Bc, Sc, Dc = ctx.shape
    assert B == Bc and Din == Dc and Din == packed.d_in

    din_p, d_pad, d_out = packed.d_in_pad, packed.d_pad, packed.d_out
    if din_p != Din:
        # TODO(synk): keep activations feature-padded upstream to avoid this pad pass.
        x = jnp.pad(x, ((0, 0), (0, 0), (0, din_p - Din)))
        ctx = jnp.pad(ctx, ((0, 0), (0, 0), (0, din_p - Din)))

    num_tc, vmem_cap = _tpu_target()
    tb, sct = _pick_tiles(B, S, Sc, din_p, d_pad, num_tc, vmem_cap)
    fp = _step_footprint_bytes(tb, S, sct, din_p, d_pad)
    vmem_limit = int(min(vmem_cap * 3 // 4, max(32 * _MIB, int(fp * 1.5))))
    grid = (B // tb, Sc // sct)

    kernel = functools.partial(_up_triangle1_kernel, d_out=d_out,
                               scale=1.0 / math.sqrt(d_out))

    def run(single_buffer_consts):
        def const_spec(shape):
            kw = dict(pipeline_mode=pl.Buffered(1)) if single_buffer_consts else {}
            return pl.BlockSpec(shape, lambda b, k: (0,) * len(shape), **kw)

        return pl.pallas_call(
            kernel,
            out_shape=jax.ShapeDtypeStruct((B, S, d_pad), jnp.float32),
            grid_spec=pltpu.PrefetchScalarGridSpec(
                num_scalar_prefetch=0,
                grid=grid,
                in_specs=[
                    pl.BlockSpec((tb, S, din_p), lambda b, k: (b, 0, 0)),
                    pl.BlockSpec((tb, sct, din_p), lambda b, k: (b, k, 0)),
                    const_spec((din_p, d_pad)),
                    const_spec((din_p, 2 * d_pad)),
                    const_spec((2 * d_pad, 2 * d_pad)),
                    const_spec((8, d_pad)),
                ],
                out_specs=pl.BlockSpec((tb, S, d_pad), lambda b, k: (b, 0, 0)),
                scratch_shapes=[
                    pltpu.VMEM((tb, S, d_pad), jnp.bfloat16),   # Q (reused twice)
                    pltpu.VMEM((tb, S, 1), jnp.float32),        # running max
                    pltpu.VMEM((tb, S, 1), jnp.float32),        # running denom
                    pltpu.VMEM((tb, S, d_pad), jnp.float32),    # running numerator
                ],
            ),
            compiler_params=pltpu.CompilerParams(
                dimension_semantics=("parallel", "arbitrary"),
                vmem_limit_bytes=vmem_limit,
            ),
        )(x, ctx, packed.wq, packed.wkv, packed.wig, packed.slab)

    try:
        out = run(True)
    except Exception:
        # TODO(synk): pl.Buffered(1) single-buffering of constant weights not
        # supported on this jax build; fall back to default double-buffering.
        out = run(False)

    if d_pad != d_out:
        out = out[..., :d_out]
    return out


# --------------------------------------------------------------------------
# Parameter init + demo
# --------------------------------------------------------------------------
def init_params(key, in_features, out_features):
    ks = jax.random.split(key, 5)
    std_in = 1.0 / math.sqrt(in_features)
    std_cat = 1.0 / math.sqrt(2 * out_features)
    return {
        "wq": jax.random.normal(ks[0], (in_features, out_features), jnp.float32) * std_in,
        "wk": jax.random.normal(ks[1], (in_features, out_features), jnp.float32) * std_in,
        "wv": jax.random.normal(ks[2], (in_features, out_features), jnp.float32) * std_in,
        "wi": jax.random.normal(ks[3], (2 * out_features, out_features), jnp.float32) * std_cat,
        "wg": jax.random.normal(ks[4], (2 * out_features, out_features), jnp.float32) * std_cat,
        "bq": jnp.zeros((out_features,), jnp.float32),
        "bk": jnp.zeros((out_features,), jnp.float32),
        "bv": jnp.zeros((out_features,), jnp.float32),
        "bi": jnp.zeros((out_features,), jnp.float32),
        "bg": jnp.zeros((out_features,), jnp.float32),
        "gamma": jnp.ones((out_features,), jnp.float32),   # LayerNorm weight
        "beta": jnp.zeros((out_features,), jnp.float32),   # LayerNorm bias
    }


if __name__ == "__main__":
    B, S, Sc = 2, 8, 8
    in_features, out_features = 32, 32

    key = jax.random.PRNGKey(0)
    kx, kc, kp = jax.random.split(key, 3)
    x = jax.random.normal(kx, (B, S, in_features), jnp.float32)
    ctx = jax.random.normal(kc, (B, Sc, in_features), jnp.float32)
    params = init_params(kp, in_features, out_features)

    packed = pack_params(params)          # pack/pad weights once, reuse across calls
    out = up_triangle1(x, ctx, packed)
    jax.block_until_ready(out)
    assert out.shape == (B, S, out_features)
    assert bool(jnp.all(out >= 0.0))      # ReLU output is non-negative
    assert bool(jnp.all(jnp.isfinite(out)))
    print("KERNEL_OK")
</pallas_src>

<mosaic_0001>
module attributes {stable_mosaic.version = 11 : i64} {
  func.func @_up_triangle1_kernel(%arg0: i32, %arg1: i32, %arg2: memref<2x8x128xf32, #tpu.memory_space<vmem>>, %arg3: memref<2x8x128xf32, #tpu.memory_space<vmem>>, %arg4: memref<128x128xbf16, #tpu.memory_space<vmem>>, %arg5: memref<128x256xbf16, #tpu.memory_space<vmem>>, %arg6: memref<256x256xbf16, #tpu.memory_space<vmem>>, %arg7: memref<8x128xf32, #tpu.memory_space<vmem>>, %arg8: memref<2x8x128xf32, #tpu.memory_space<vmem>>, %arg9: memref<2x8x128xbf16, #tpu.memory_space<vmem>>, %arg10: memref<2x8x1xf32, #tpu.memory_space<vmem>>, %arg11: memref<2x8x1xf32, #tpu.memory_space<vmem>>, %arg12: memref<2x8x128xf32, #tpu.memory_space<vmem>>) attributes {dimension_semantics = [#tpu.dimension_semantics<parallel>, #tpu.dimension_semantics<arbitrary>], iteration_bounds = array<i64: 1, 1>, scalar_prefetch = 0 : i64, scratch_operands = 4 : i64, tpu.core_type = #tpu.core_type<tc>, window_params = [{transform_indices = @transform_0, window_bounds = array<i64: 2, 8, 128>}, {transform_indices = @transform_1, window_bounds = array<i64: 2, 8, 128>}, {pipeline_mode = #tpu.pipeline_mode<synchronous>, transform_indices = @transform_2, window_bounds = array<i64: 128, 128>}, {pipeline_mode = #tpu.pipeline_mode<synchronous>, transform_indices = @transform_3, window_bounds = array<i64: 128, 256>}, {pipeline_mode = #tpu.pipeline_mode<synchronous>, transform_indices = @transform_4, window_bounds = array<i64: 256, 256>}, {pipeline_mode = #tpu.pipeline_mode<synchronous>, transform_indices = @transform_5, window_bounds = array<i64: 8, 128>}, {transform_indices = @transform_6, window_bounds = array<i64: 2, 8, 128>}]} {
    %c0_i32 = arith.constant 0 : i32
    %0 = arith.cmpi eq, %arg1, %c0_i32 : i32
    %1 = arith.extui %0 : i1 to i32
    %c0_i32_0 = arith.constant 0 : i32
    %2 = arith.cmpi ne, %1, %c0_i32_0 : i32
    scf.if %2 {
      %c0_38 = arith.constant 0 : index
      %c0_39 = arith.constant 0 : index
      %c0_40 = arith.constant 0 : index
      %51 = vector.load %arg2[%c0_38, %c0_39, %c0_40] : memref<2x8x128xf32, #tpu.memory_space<vmem>>, vector<2x8x128xf32>
      %52 = arith.truncf %51 : vector<2x8x128xf32> to vector<2x8x128xbf16>
      %53 = vector.shape_cast %52 : vector<2x8x128xbf16> to vector<16x128xbf16>
      %c0_41 = arith.constant 0 : index
      %c0_42 = arith.constant 0 : index
      %54 = vector.load %arg4[%c0_41, %c0_42] : memref<128x128xbf16, #tpu.memory_space<vmem>>, vector<128x128xbf16>
      %cst_43 = arith.constant dense<0.000000e+00> : vector<16x128xf32>
      %55 = tpu.matmul %53, %54, %cst_43 {dimension_numbers = #tpu.dot_dimension_numbers<[1], [0], [0], [1], [0, 0, 1, 1], [], []>} : vector<16x128xbf16>, vector<128x128xbf16>, vector<16x128xf32> -> vector<16x128xf32>
      %c0_44 = arith.constant 0 : index
      %c0_45 = arith.constant 0 : index
      %56 = vector.load %arg7[%c0_44, %c0_45] : memref<8x128xf32, #tpu.memory_space<vmem>>, vector<1x128xf32>
      %57 = vector.broadcast %56 : vector<1x128xf32> to vector<16x128xf32>
      %58 = arith.addf %55, %57 : vector<16x128xf32>
      %59 = vector.shape_cast %58 : vector<16x128xf32> to vector<2x8x128xf32>
      %60 = arith.truncf %59 : vector<2x8x128xf32> to vector<2x8x128xbf16>
      %c0_46 = arith.constant 0 : index
      %c0_47 = arith.constant 0 : index
      %c0_48 = arith.constant 0 : index
      %61 = vector.load %arg9[%c0_46, %c0_47, %c0_48] : memref<2x8x128xbf16, #tpu.memory_space<vmem>>, vector<2x8x128xbf16>
      tpu.vector_store %arg9[%c0_46, %c0_47, %c0_48], %60 {strides = array<i32>} : memref<2x8x128xbf16, #tpu.memory_space<vmem>>, vector<2x8x128xbf16>,
      %cst_49 = arith.constant 0xFF800000 : f32
      %62 = vector.broadcast %cst_49 : f32 to vector<2x8x1xf32>
      %c0_50 = arith.constant 0 : index
      %c0_51 = arith.constant 0 : index
      %c0_52 = arith.constant 0 : index
      %63 = vector.load %arg10[%c0_50, %c0_51, %c0_52] : memref<2x8x1xf32, #tpu.memory_space<vmem>>, vector<2x8x1xf32>
      tpu.vector_store %arg10[%c0_50, %c0_51, %c0_52], %62 {strides = array<i32>} : memref<2x8x1xf32, #tpu.memory_space<vmem>>, vector<2x8x1xf32>,
      %cst_53 = arith.constant 0.000000e+00 : f32
      %64 = vector.broadcast %cst_53 : f32 to vector<2x8x1xf32>
      %c0_54 = arith.constant 0 : index
      %c0_55 = arith.constant 0 : index
      %c0_56 = arith.constant 0 : index
      %65 = vector.load %arg11[%c0_54, %c0_55, %c0_56] : memref<2x8x1xf32, #tpu.memory_space<vmem>>, vector<2x8x1xf32>
      tpu.vector_store %arg11[%c0_54, %c0_55, %c0_56], %64 {strides = array<i32>} : memref<2x8x1xf32, #tpu.memory_space<vmem>>, vector<2x8x1xf32>,
      %cst_57 = arith.constant 0.000000e+00 : f32
      %66 = vector.broadcast %cst_57 : f32 to vector<2x8x128xf32>
      %c0_58 = arith.constant 0 : index
      %c0_59 = arith.constant 0 : index
      %c0_60 = arith.constant 0 : index
      %67 = vector.load %arg12[%c0_58, %c0_59, %c0_60] : memref<2x8x128xf32, #tpu.memory_space<vmem>>, vector<2x8x128xf32>
      tpu.vector_store %arg12[%c0_58, %c0_59, %c0_60], %66 {strides = array<i32>} : memref<2x8x128xf32, #tpu.memory_space<vmem>>, vector<2x8x128xf32>,
    } else {
    }
    %c0 = arith.constant 0 : index
    %c0_1 = arith.constant 0 : index
    %c0_2 = arith.constant 0 : index
    %3 = vector.load %arg3[%c0, %c0_1, %c0_2] : memref<2x8x128xf32, #tpu.memory_space<vmem>>, vector<2x8x128xf32>
    %4 = arith.truncf %3 : vector<2x8x128xf32> to vector<2x8x128xbf16>
    %5 = vector.shape_cast %4 : vector<2x8x128xbf16> to vector<16x128xbf16>
    %c0_3 = arith.constant 0 : index
    %c0_4 = arith.constant 0 : index
    %6 = vector.load %arg5[%c0_3, %c0_4] : memref<128x256xbf16, #tpu.memory_space<vmem>>, vector<128x256xbf16>
    %cst = arith.constant dense<0.000000e+00> : vector<16x256xf32>
    %7 = tpu.matmul %5, %6, %cst {dimension_numbers = #tpu.dot_dimension_numbers<[1], [0], [0], [1], [0, 0, 1, 1], [], []>} : vector<16x128xbf16>, vector<128x256xbf16>, vector<16x256xf32> -> vector<16x256xf32>
    %8 = vector.extract_strided_slice %7 {offsets = [0, 0], sizes = [16, 128], strides = [1, 1]} : vector<16x256xf32> to vector<16x128xf32>
    %c1 = arith.constant 1 : index
    %c0_5 = arith.constant 0 : index
    %9 = vector.load %arg7[%c1, %c0_5] : memref<8x128xf32, #tpu.memory_space<vmem>>, vector<1x128xf32>
    %10 = vector.broadcast %9 : vector<1x128xf32> to vector<16x128xf32>
    %11 = arith.addf %8, %10 : vector<16x128xf32>
    %12 = arith.truncf %11 : vector<16x128xf32> to vector<16x128xbf16>
    %13 = vector.shape_cast %12 : vector<16x128xbf16> to vector<2x8x128xbf16>
    %14 = vector.extract_strided_slice %7 {offsets = [0, 128], sizes = [16, 128], strides = [1, 1]} : vector<16x256xf32> to vector<16x128xf32>
    %c2 = arith.constant 2 : index
    %c0_6 = arith.constant 0 : index
    %15 = vector.load %arg7[%c2, %c0_6] : memref<8x128xf32, #tpu.memory_space<vmem>>, vector<1x128xf32>
    %16 = vector.broadcast %15 : vector<1x128xf32> to vector<16x128xf32>
    %17 = arith.addf %14, %16 : vector<16x128xf32>
    %18 = arith.truncf %17 : vector<16x128xf32> to vector<16x128xbf16>
    %19 = vector.shape_cast %18 : vector<16x128xbf16> to vector<2x8x128xbf16>
    %c0_7 = arith.constant 0 : index
    %c0_8 = arith.constant 0 : index
    %c0_9 = arith.constant 0 : index
    %20 = vector.load %arg9[%c0_7, %c0_8, %c0_9] : memref<2x8x128xbf16, #tpu.memory_space<vmem>>, vector<2x8x128xbf16>
    "tpu.trace_start"() <{level = 10 : i32, message = "bqd,bkd->bqk"}> : () -> ()
    %cst_10 = arith.constant dense<0.000000e+00> : vector<2x8x8xf32>
    %21 = tpu.matmul %20, %13, %cst_10 {dimension_numbers = #tpu.dot_dimension_numbers<[2], [2], [1], [1], [0, 0, 0, 1, 1, 1], [0], [0]>} : vector<2x8x128xbf16>, vector<2x8x128xbf16>, vector<2x8x8xf32> -> vector<2x8x8xf32>
    "tpu.trace_stop"() : () -> ()
    %cst_11 = arith.constant 0.176776692 : f32
    %22 = vector.broadcast %cst_11 : f32 to vector<2x8x8xf32>
    %23 = arith.mulf %21, %22 : vector<2x8x8xf32>
    %c0_12 = arith.constant 0 : index
    %c0_13 = arith.constant 0 : index
    %c0_14 = arith.constant 0 : index
    %24 = vector.load %arg10[%c0_12, %c0_13, %c0_14] : memref<2x8x1xf32, #tpu.memory_space<vmem>>, vector<2x8x1xf32>
    %cst_15 = arith.constant dense<0xFF800000> : vector<2x8xf32>
    %25 = vector.multi_reduction <maximumf>, %23, %cst_15 [2] : vector<2x8x8xf32> to vector<2x8xf32>
    %26 = vector.shape_cast %25 : vector<2x8xf32> to vector<2x8x1xf32>
    %27 = arith.maximumf %24, %26 : vector<2x8x1xf32>
    %c0_16 = arith.constant 0 : index
    %c0_17 = arith.constant 0 : index
    %c0_18 = arith.constant 0 : index
    %28 = vector.load %arg10[%c0_16, %c0_17, %c0_18] : memref<2x8x1xf32, #tpu.memory_space<vmem>>, vector<2x8x1xf32>
    %29 = arith.subf %28, %27 : vector<2x8x1xf32>
    %30 = math.exp %29 : vector<2x8x1xf32>
    %31 = vector.broadcast %27 : vector<2x8x1xf32> to vector<2x8x8xf32>
    %32 = arith.subf %23, %31 : vector<2x8x8xf32>
    %33 = math.exp %32 : vector<2x8x8xf32>
    %c0_19 = arith.constant 0 : index
    %c0_20 = arith.constant 0 : index
    %c0_21 = arith.constant 0 : index
    %34 = vector.load %arg11[%c0_19, %c0_20, %c0_21] : memref<2x8x1xf32, #tpu.memory_space<vmem>>, vector<2x8x1xf32>
    %35 = arith.mulf %30, %34 : vector<2x8x1xf32>
    %cst_22 = arith.constant dense<0.000000e+00> : vector<2x8xf32>
    %36 = vector.multi_reduction <add>, %33, %cst_22 [2] : vector<2x8x8xf32> to vector<2x8xf32>
    %37 = vector.shape_cast %36 : vector<2x8xf32> to vector<2x8x1xf32>
    %38 = arith.addf %35, %37 : vector<2x8x1xf32>
    %c0_23 = arith.constant 0 : index
    %c0_24 = arith.constant 0 : index
    %c0_25 = arith.constant 0 : index
    %39 = vector.load %arg11[%c0_23, %c0_24, %c0_25] : memref<2x8x1xf32, #tpu.memory_space<vmem>>, vector<2x8x1xf32>
    tpu.vector_store %arg11[%c0_23, %c0_24, %c0_25], %38 {strides = array<i32>} : memref<2x8x1xf32, #tpu.memory_space<vmem>>, vector<2x8x1xf32>,
    %c0_26 = arith.constant 0 : index
    %c0_27 = arith.constant 0 : index
    %c0_28 = arith.constant 0 : index
    %40 = vector.load %arg12[%c0_26, %c0_27, %c0_28] : memref<2x8x128xf32, #tpu.memory_space<vmem>>, vector<2x8x128xf32>
    %41 = vector.broadcast %30 : vector<2x8x1xf32> to vector<2x8x128xf32>
    %42 = arith.mulf %41, %40 : vector<2x8x128xf32>
    %43 = arith.truncf %33 : vector<2x8x8xf32> to vector<2x8x8xbf16>
    "tpu.trace_start"() <{level = 10 : i32, message = "bqk,bkd->bqd"}> : () -> ()
    %cst_29 = arith.constant dense<0.000000e+00> : vector<2x8x128xf32>
    %44 = tpu.matmul %43, %19, %cst_29 {dimension_numbers = #tpu.dot_dimension_numbers<[2], [1], [1], [2], [0, 0, 0, 1, 1, 2], [0], [0]>} : vector<2x8x8xbf16>, vector<2x8x128xbf16>, vector<2x8x128xf32> -> vector<2x8x128xf32>
    "tpu.trace_stop"() : () -> ()
    %45 = arith.addf %42, %44 : vector<2x8x128xf32>
    %c0_30 = arith.constant 0 : index
    %c0_31 = arith.constant 0 : index
    %c0_32 = arith.constant 0 : index
    %46 = vector.load %arg12[%c0_30, %c0_31, %c0_32] : memref<2x8x128xf32, #tpu.memory_space<vmem>>, vector<2x8x128xf32>
    tpu.vector_store %arg12[%c0_30, %c0_31, %c0_32], %45 {strides = array<i32>} : memref<2x8x128xf32, #tpu.memory_space<vmem>>, vector<2x8x128xf32>,
    %c0_33 = arith.constant 0 : index
    %c0_34 = arith.constant 0 : index
    %c0_35 = arith.constant 0 : index
    %47 = vector.load %arg10[%c0_33, %c0_34, %c0_35] : memref<2x8x1xf32, #tpu.memory_space<vmem>>, vector<2x8x1xf32>
    tpu.vector_store %arg10[%c0_33, %c0_34, %c0_35], %27 {strides = array<i32>} : memref<2x8x1xf32, #tpu.memory_space<vmem>>, vector<2x8x1xf32>,
    %c0_i32_36 = arith.constant 0 : i32
    %48 = arith.cmpi eq, %arg1, %c0_i32_36 : i32
    %49 = arith.extui %48 : i1 to i32
    %c0_i32_37 = arith.constant 0 : i32
    %50 = arith.cmpi ne, %49, %c0_i32_37 : i32
    scf.if %50 {
      %c0_38 = arith.constant 0 : index
      %c0_39 = arith.constant 0 : index
      %c0_40 = arith.constant 0 : index
      %51 = vector.load %arg12[%c0_38, %c0_39, %c0_40] : memref<2x8x128xf32, #tpu.memory_space<vmem>>, vector<2x8x128xf32>
      %c0_41 = arith.constant 0 : index
      %c0_42 = arith.constant 0 : index
      %c0_43 = arith.constant 0 : index
      %52 = vector.load %arg11[%c0_41, %c0_42, %c0_43] : memref<2x8x1xf32, #tpu.memory_space<vmem>>, vector<2x8x1xf32>
      %53 = tpu.reciprocal %52 {approx = true} : vector<2x8x1xf32> -> vector<2x8x1xf32>
      %54 = vector.broadcast %53 : vector<2x8x1xf32> to vector<2x8x128xf32>
      %55 = arith.mulf %51, %54 : vector<2x8x128xf32>
      %56 = vector.shape_cast %55 : vector<2x8x128xf32> to vector<16x128xf32>
      %57 = arith.truncf %56 : vector<16x128xf32> to vector<16x128xbf16>
      %c0_44 = arith.constant 0 : index
      %c0_45 = arith.constant 0 : index
      %c0_46 = arith.constant 0 : index
      %58 = vector.load %arg9[%c0_44, %c0_45, %c0_46] : memref<2x8x128xbf16, #tpu.memory_space<vmem>>, vector<2x8x128xbf16>
      %59 = vector.shape_cast %58 : vector<2x8x128xbf16> to vector<16x128xbf16>
      %c0_47 = arith.constant 0 : index
      %c0_48 = arith.constant 0 : index
      %60 = vector.load %arg6[%c0_47, %c0_48] : memref<256x256xbf16, #tpu.memory_space<vmem>>, vector<128x256xbf16>
      %cst_49 = arith.constant dense<0.000000e+00> : vector<16x256xf32>
      %61 = tpu.matmul %57, %60, %cst_49 {dimension_numbers = #tpu.dot_dimension_numbers<[1], [0], [0], [1], [0, 0, 1, 1], [], []>} : vector<16x128xbf16>, vector<128x256xbf16>, vector<16x256xf32> -> vector<16x256xf32>
      %c128 = arith.constant 128 : index
      %c0_50 = arith.constant 0 : index
      %62 = vector.load %arg6[%c128, %c0_50] : memref<256x256xbf16, #tpu.memory_space<vmem>>, vector<128x256xbf16>
      %cst_51 = arith.constant dense<0.000000e+00> : vector<16x256xf32>
      %63 = tpu.matmul %59, %62, %cst_51 {dimension_numbers = #tpu.dot_dimension_numbers<[1], [0], [0], [1], [0, 0, 1, 1], [], []>} : vector<16x128xbf16>, vector<128x256xbf16>, vector<16x256xf32> -> vector<16x256xf32>
      %64 = arith.addf %61, %63 : vector<16x256xf32>
      %65 = vector.extract_strided_slice %64 {offsets = [0, 0], sizes = [16, 128], strides = [1, 1]} : vector<16x256xf32> to vector<16x128xf32>
      %c3 = arith.constant 3 : index
      %c0_52 = arith.constant 0 : index
      %66 = vector.load %arg7[%c3, %c0_52] : memref<8x128xf32, #tpu.memory_space<vmem>>, vector<1x128xf32>
      %67 = vector.broadcast %66 : vector<1x128xf32> to vector<16x128xf32>
      %68 = arith.addf %65, %67 : vector<16x128xf32>
      %69 = vector.extract_strided_slice %64 {offsets = [0, 128], sizes = [16, 128], strides = [1, 1]} : vector<16x256xf32> to vector<16x128xf32>
      %c4 = arith.constant 4 : index
      %c0_53 = arith.constant 0 : index
      %70 = vector.load %arg7[%c4, %c0_53] : memref<8x128xf32, #tpu.memory_space<vmem>>, vector<1x128xf32>
      %71 = vector.broadcast %70 : vector<1x128xf32> to vector<16x128xf32>
      %72 = arith.addf %69, %71 : vector<16x128xf32>
      %73 = arith.negf %72 : vector<16x128xf32>
      %74 = math.exp %73 : vector<16x128xf32>
      %cst_54 = arith.constant 1.000000e+00 : f32
      %75 = vector.broadcast %cst_54 : f32 to vector<16x128xf32>
      %76 = arith.addf %75, %74 : vector<16x128xf32>
      %77 = arith.divf %75, %76 : vector<16x128xf32>
      %78 = arith.mulf %68, %77 : vector<16x128xf32>
      %cst_55 = arith.constant dense<0.000000e+00> : vector<16xf32>
      %79 = vector.multi_reduction <add>, %78, %cst_55 [1] : vector<16x128xf32> to vector<16xf32>
      %80 = vector.shape_cast %79 : vector<16xf32> to vector<16x1xf32>
      %cst_56 = arith.constant 3.125000e-02 : f32
      %81 = vector.broadcast %cst_56 : f32 to vector<16x1xf32>
      %82 = arith.mulf %80, %81 : vector<16x1xf32>
      %83 = tpu.iota {dimensions = array<i32: 1>} : vector<16x128xi32>
      %c32_i32 = arith.constant 32 : i32
      %84 = vector.broadcast %c32_i32 : i32 to vector<16x128xi32>
      %85 = arith.cmpi slt, %83, %84 : vector<16x128xi32>
      %86 = vector.broadcast %82 : vector<16x1xf32> to vector<16x128xf32>
      %87 = arith.subf %78, %86 : vector<16x128xf32>
      %cst_57 = arith.constant 0.000000e+00 : f32
      %88 = vector.broadcast %cst_57 : f32 to vector<16x128xf32>
      %89 = arith.select %85, %87, %88 : vector<16x128xi1>, vector<16x128xf32>
      %90 = arith.mulf %89, %89 : vector<16x128xf32>
      %cst_58 = arith.constant dense<0.000000e+00> : vector<16xf32>
      %91 = vector.multi_reduction <add>, %90, %cst_58 [1] : vector<16x128xf32> to vector<16xf32>
      %92 = vector.shape_cast %91 : vector<16xf32> to vector<16x1xf32>
      %cst_59 = arith.constant 3.125000e-02 : f32
      %93 = vector.broadcast %cst_59 : f32 to vector<16x1xf32>
      %94 = arith.mulf %92, %93 : vector<16x1xf32>
      %cst_60 = arith.constant 9.99999974E-6 : f32
      %95 = vector.broadcast %cst_60 : f32 to vector<16x1xf32>
      %96 = arith.addf %94, %95 : vector<16x1xf32>
      %97 = math.rsqrt %96 : vector<16x1xf32>
      %98 = vector.broadcast %97 : vector<16x1xf32> to vector<16x128xf32>
      %99 = arith.mulf %89, %98 : vector<16x128xf32>
      %c5 = arith.constant 5 : index
      %c0_61 = arith.constant 0 : index
      %100 = vector.load %arg7[%c5, %c0_61] : memref<8x128xf32, #tpu.memory_space<vmem>>, vector<1x128xf32>
      %101 = vector.broadcast %100 : vector<1x128xf32> to vector<16x128xf32>
      %102 = arith.mulf %99, %101 : vector<16x128xf32>
      %c6 = arith.constant 6 : index
      %c0_62 = arith.constant 0 : index
      %103 = vector.load %arg7[%c6, %c0_62] : memref<8x128xf32, #tpu.memory_space<vmem>>, vector<1x128xf32>
      %104 = vector.broadcast %103 : vector<1x128xf32> to vector<16x128xf32>
      %105 = arith.addf %102, %104 : vector<16x128xf32>
      %cst_63 = arith.constant 0.000000e+00 : f32
      %106 = vector.broadcast %cst_63 : f32 to vector<16x128xf32>
      %107 = arith.maximumf %105, %106 : vector<16x128xf32>
      %108 = vector.shape_cast %107 : vector<16x128xf32> to vector<2x8x128xf32>
      %c0_64 = arith.constant 0 : index
      %c0_65 = arith.constant 0 : index
      %c0_66 = arith.constant 0 : index
      %109 = vector.load %arg8[%c0_64, %c0_65, %c0_66] : memref<2x8x128xf32, #tpu.memory_space<vmem>>, vector<2x8x128xf32>
      tpu.vector_store %arg8[%c0_64, %c0_65, %c0_66], %108 {strides = array<i32>} : memref<2x8x128xf32, #tpu.memory_space<vmem>>, vector<2x8x128xf32>,
    } else {
    }
    return
  }
  func.func @transform_0(%arg0: i32, %arg1: i32) -> (i32, i32, i32) {
    %c0_i32 = arith.constant 0 : i32
    %c0_i32_0 = arith.constant 0 : i32
    %c0_i32_1 = arith.constant 0 : i32
    return %arg0, %c0_i32, %c0_i32_0 : i32, i32, i32
  }
  func.func @transform_1(%arg0: i32, %arg1: i32) -> (i32, i32, i32) {
    %c0_i32 = arith.constant 0 : i32
    %c0_i32_0 = arith.constant 0 : i32
    return %arg0, %arg1, %c0_i32 : i32, i32, i32
  }
  func.func @transform_2(%arg0: i32, %arg1: i32) -> (i32, i32) {
    %c0_i32 = arith.constant 0 : i32
    %c0_i32_0 = arith.constant 0 : i32
    %c0_i32_1 = arith.constant 0 : i32
    return %c0_i32, %c0_i32_0 : i32, i32
  }
  func.func @transform_3(%arg0: i32, %arg1: i32) -> (i32, i32) {
    %c0_i32 = arith.constant 0 : i32
    %c0_i32_0 = arith.constant 0 : i32
    %c0_i32_1 = arith.constant 0 : i32
    return %c0_i32, %c0_i32_0 : i32, i32
  }
  func.func @transform_4(%arg0: i32, %arg1: i32) -> (i32, i32) {
    %c0_i32 = arith.constant 0 : i32
    %c0_i32_0 = arith.constant 0 : i32
    %c0_i32_1 = arith.constant 0 : i32
    return %c0_i32, %c0_i32_0 : i32, i32
  }
  func.func @transform_5(%arg0: i32, %arg1: i32) -> (i32, i32) {
    %c0_i32 = arith.constant 0 : i32
    %c0_i32_0 = arith.constant 0 : i32
    %c0_i32_1 = arith.constant 0 : i32
    return %c0_i32, %c0_i32_0 : i32, i32
  }
  func.func @transform_6(%arg0: i32, %arg1: i32) -> (i32, i32, i32) {
    %c0_i32 = arith.constant 0 : i32
    %c0_i32_0 = arith.constant 0 : i32
    %c0_i32_1 = arith.constant 0 : i32
    return %arg0, %c0_i32, %c0_i32_0 : i32, i32, i32
  }
}

module attributes {stable_mosaic.version = 11 : i64} {
  func.func @_up_triangle1_kernel(%arg0: i32, %arg1: i32, %arg2: memref<2x8x128xf32, #tpu.memory_space<vmem>>, %arg3: memref<2x8x128xf32, #tpu.memory_space<vmem>>, %arg4: memref<128x128xbf16, #tpu.memory_space<vmem>>, %arg5: memref<128x256xbf16, #tpu.memory_space<vmem>>, %arg6: memref<256x256xbf16, #tpu.memory_space<vmem>>, %arg7: memref<8x128xf32, #tpu.memory_space<vmem>>, %arg8: memref<2x8x128xf32, #tpu.memory_space<vmem>>, %arg9: memref<2x8x128xbf16, #tpu.memory_space<vmem>>, %arg10: memref<2x8x1xf32, #tpu.memory_space<vmem>>, %arg11: memref<2x8x1xf32, #tpu.memory_space<vmem>>, %arg12: memref<2x8x128xf32, #tpu.memory_space<vmem>>) attributes {dimension_semantics = [#tpu.dimension_semantics<parallel>, #tpu.dimension_semantics<arbitrary>], iteration_bounds = array<i64: 1, 1>, scalar_prefetch = 0 : i64, scratch_operands = 4 : i64, tpu.core_type = #tpu.core_type<tc>, window_params = [{transform_indices = @transform_0, window_bounds = array<i64: 2, 8, 128>}, {transform_indices = @transform_1, window_bounds = array<i64: 2, 8, 128>}, {pipeline_mode = #tpu.pipeline_mode<synchronous>, transform_indices = @transform_2, window_bounds = array<i64: 128, 128>}, {pipeline_mode = #tpu.pipeline_mode<synchronous>, transform_indices = @transform_3, window_bounds = array<i64: 128, 256>}, {pipeline_mode = #tpu.pipeline_mode<synchronous>, transform_indices = @transform_4, window_bounds = array<i64: 256, 256>}, {pipeline_mode = #tpu.pipeline_mode<synchronous>, transform_indices = @transform_5, window_bounds = array<i64: 8, 128>}, {transform_indices = @transform_6, window_bounds = array<i64: 2, 8, 128>}]} {
    %c0_i32 = arith.constant 0 : i32
    %0 = arith.cmpi eq, %arg1, %c0_i32 : i32
    %1 = arith.extui %0 : i1 to i32
    %c0_i32_0 = arith.constant 0 : i32
    %2 = arith.cmpi ne, %1, %c0_i32_0 : i32
    scf.if %2 {
      %c0_38 = arith.constant 0 : index
      %c0_39 = arith.constant 0 : index
      %c0_40 = arith.constant 0 : index
      %51 = vector.load %arg2[%c0_38, %c0_39, %c0_40] : memref<2x8x128xf32, #tpu.memory_space<vmem>>, vector<2x8x128xf32>
      %52 = arith.truncf %51 : vector<2x8x128xf32> to vector<2x8x128xbf16>
      %53 = vector.shape_cast %52 : vector<2x8x128xbf16> to vector<16x128xbf16>
      %c0_41 = arith.constant 0 : index
      %c0_42 = arith.constant 0 : index
      %54 = vector.load %arg4[%c0_41, %c0_42] : memref<128x128xbf16, #tpu.memory_space<vmem>>, vector<128x128xbf16>
      %cst_43 = arith.constant dense<0.000000e+00> : vector<16x128xf32>
      %55 = tpu.matmul %53, %54, %cst_43 {dimension_numbers = #tpu.dot_dimension_numbers<[1], [0], [0], [1], [0, 0, 1, 1], [], []>} : vector<16x128xbf16>, vector<128x128xbf16>, vector<16x128xf32> -> vector<16x128xf32>
      %c0_44 = arith.constant 0 : index
      %c0_45 = arith.constant 0 : index
      %56 = vector.load %arg7[%c0_44, %c0_45] : memref<8x128xf32, #tpu.memory_space<vmem>>, vector<1x128xf32>
      %57 = vector.broadcast %56 : vector<1x128xf32> to vector<16x128xf32>
      %58 = arith.addf %55, %57 : vector<16x128xf32>
      %59 = vector.shape_cast %58 : vector<16x128xf32> to vector<2x8x128xf32>
      %60 = arith.truncf %59 : vector<2x8x128xf32> to vector<2x8x128xbf16>
      %c0_46 = arith.constant 0 : index
      %c0_47 = arith.constant 0 : index
      %c0_48 = arith.constant 0 : index
      %61 = vector.load %arg9[%c0_46, %c0_47, %c0_48] : memref<2x8x128xbf16, #tpu.memory_space<vmem>>, vector<2x8x128xbf16>
      tpu.vector_store %arg9[%c0_46, %c0_47, %c0_48], %60 {strides = array<i32>} : memref<2x8x128xbf16, #tpu.memory_space<vmem>>, vector<2x8x128xbf16>,
      %cst_49 = arith.constant 0xFF800000 : f32
      %62 = vector.broadcast %cst_49 : f32 to vector<2x8x1xf32>
      %c0_50 = arith.constant 0 : index
      %c0_51 = arith.constant 0 : index
      %c0_52 = arith.constant 0 : index
      %63 = vector.load %arg10[%c0_50, %c0_51, %c0_52] : memref<2x8x1xf32, #tpu.memory_space<vmem>>, vector<2x8x1xf32>
      tpu.vector_store %arg10[%c0_50, %c0_51, %c0_52], %62 {strides = array<i32>} : memref<2x8x1xf32, #tpu.memory_space<vmem>>, vector<2x8x1xf32>,
      %cst_53 = arith.constant 0.000000e+00 : f32
      %64 = vector.broadcast %cst_53 : f32 to vector<2x8x1xf32>
      %c0_54 = arith.constant 0 : index
      %c0_55 = arith.constant 0 : index
      %c0_56 = arith.constant 0 : index
      %65 = vector.load %arg11[%c0_54, %c0_55, %c0_56] : memref<2x8x1xf32, #tpu.memory_space<vmem>>, vector<2x8x1xf32>
      tpu.vector_store %arg11[%c0_54, %c0_55, %c0_56], %64 {strides = array<i32>} : memref<2x8x1xf32, #tpu.memory_space<vmem>>, vector<2x8x1xf32>,
      %cst_57 = arith.constant 0.000000e+00 : f32
      %66 = vector.broadcast %cst_57 : f32 to vector<2x8x128xf32>
      %c0_58 = arith.constant 0 : index
      %c0_59 = arith.constant 0 : index
      %c0_60 = arith.constant 0 : index
      %67 = vector.load %arg12[%c0_58, %c0_59, %c0_60] : memref<2x8x128xf32, #tpu.memory_space<vmem>>, vector<2x8x128xf32>
      tpu.vector_store %arg12[%c0_58, %c0_59, %c0_60], %66 {strides = array<i32>} : memref<2x8x128xf32, #tpu.memory_space<vmem>>, vector<2x8x128xf32>,
    } else {
    }
    %c0 = arith.constant 0 : index
    %c0_1 = arith.constant 0 : index
    %c0_2 = arith.constant 0 : index
    %3 = vector.load %arg3[%c0, %c0_1, %c0_2] : memref<2x8x128xf32, #tpu.memory_space<vmem>>, vector<2x8x128xf32>
    %4 = arith.truncf %3 : vector<2x8x128xf32> to vector<2x8x128xbf16>
    %5 = vector.shape_cast %4 : vector<2x8x128xbf16> to vector<16x128xbf16>
    %c0_3 = arith.constant 0 : index
    %c0_4 = arith.constant 0 : index
    %6 = vector.load %arg5[%c0_3, %c0_4] : memref<128x256xbf16, #tpu.memory_space<vmem>>, vector<128x256xbf16>
    %cst = arith.constant dense<0.000000e+00> : vector<16x256xf32>
    %7 = tpu.matmul %5, %6, %cst {dimension_numbers = #tpu.dot_dimension_numbers<[1], [0], [0], [1], [0, 0, 1, 1], [], []>} : vector<16x128xbf16>, vector<128x256xbf16>, vector<16x256xf32> -> vector<16x256xf32>
    %8 = vector.extract_strided_slice %7 {offsets = [0, 0], sizes = [16, 128], strides = [1, 1]} : vector<16x256xf32> to vector<16x128xf32>
    %c1 = arith.constant 1 : index
    %c0_5 = arith.constant 0 : index
    %9 = vector.load %arg7[%c1, %c0_5] : memref<8x128xf32, #tpu.memory_space<vmem>>, vector<1x128xf32>
    %10 = vector.broadcast %9 : vector<1x128xf32> to vector<16x128xf32>
    %11 = arith.addf %8, %10 : vector<16x128xf32>
    %12 = arith.truncf %11 : vector<16x128xf32> to vector<16x128xbf16>
    %13 = vector.shape_cast %12 : vector<16x128xbf16> to vector<2x8x128xbf16>
    %14 = vector.extract_strided_slice %7 {offsets = [0, 128], sizes = [16, 128], strides = [1, 1]} : vector<16x256xf32> to vector<16x128xf32>
    %c2 = arith.constant 2 : index
    %c0_6 = arith.constant 0 : index
    %15 = vector.load %arg7[%c2, %c0_6] : memref<8x128xf32, #tpu.memory_space<vmem>>, vector<1x128xf32>
    %16 = vector.broadcast %15 : vector<1x128xf32> to vector<16x128xf32>
    %17 = arith.addf %14, %16 : vector<16x128xf32>
    %18 = arith.truncf %17 : vector<16x128xf32> to vector<16x128xbf16>
    %19 = vector.shape_cast %18 : vector<16x128xbf16> to vector<2x8x128xbf16>
    %c0_7 = arith.constant 0 : index
    %c0_8 = arith.constant 0 : index
    %c0_9 = arith.constant 0 : index
    %20 = vector.load %arg9[%c0_7, %c0_8, %c0_9] : memref<2x8x128xbf16, #tpu.memory_space<vmem>>, vector<2x8x128xbf16>
    "tpu.trace_start"() <{level = 10 : i32, message = "bqd,bkd->bqk"}> : () -> ()
    %cst_10 = arith.constant dense<0.000000e+00> : vector<2x8x8xf32>
    %21 = tpu.matmul %20, %13, %cst_10 {dimension_numbers = #tpu.dot_dimension_numbers<[2], [2], [1], [1], [0, 0, 0, 1, 1, 1], [0], [0]>} : vector<2x8x128xbf16>, vector<2x8x128xbf16>, vector<2x8x8xf32> -> vector<2x8x8xf32>
    "tpu.trace_stop"() : () -> ()
    %cst_11 = arith.constant 0.176776692 : f32
    %22 = vector.broadcast %cst_11 : f32 to vector<2x8x8xf32>
    %23 = arith.mulf %21, %22 : vector<2x8x8xf32>
    %c0_12 = arith.constant 0 : index
    %c0_13 = arith.constant 0 : index
    %c0_14 = arith.constant 0 : index
    %24 = vector.load %arg10[%c0_12, %c0_13, %c0_14] : memref<2x8x1xf32, #tpu.memory_space<vmem>>, vector<2x8x1xf32>
    %cst_15 = arith.constant dense<0xFF800000> : vector<2x8xf32>
    %25 = vector.multi_reduction <maximumf>, %23, %cst_15 [2] : vector<2x8x8xf32> to vector<2x8xf32>
    %26 = vector.shape_cast %25 : vector<2x8xf32> to vector<2x8x1xf32>
    %27 = arith.maximumf %24, %26 : vector<2x8x1xf32>
    %c0_16 = arith.constant 0 : index
    %c0_17 = arith.constant 0 : index
    %c0_18 = arith.constant 0 : index
    %28 = vector.load %arg10[%c0_16, %c0_17, %c0_18] : memref<2x8x1xf32, #tpu.memory_space<vmem>>, vector<2x8x1xf32>
    %29 = arith.subf %28, %27 : vector<2x8x1xf32>
    %30 = math.exp %29 : vector<2x8x1xf32>
    %31 = vector.broadcast %27 : vector<2x8x1xf32> to vector<2x8x8xf32>
    %32 = arith.subf %23, %31 : vector<2x8x8xf32>
    %33 = math.exp %32 : vector<2x8x8xf32>
    %c0_19 = arith.constant 0 : index
    %c0_20 = arith.constant 0 : index
    %c0_21 = arith.constant 0 : index
    %34 = vector.load %arg11[%c0_19, %c0_20, %c0_21] : memref<2x8x1xf32, #tpu.memory_space<vmem>>, vector<2x8x1xf32>
    %35 = arith.mulf %30, %34 : vector<2x8x1xf32>
    %cst_22 = arith.constant dense<0.000000e+00> : vector<2x8xf32>
    %36 = vector.multi_reduction <add>, %33, %cst_22 [2] : vector<2x8x8xf32> to vector<2x8xf32>
    %37 = vector.shape_cast %36 : vector<2x8xf32> to vector<2x8x1xf32>
    %38 = arith.addf %35, %37 : vector<2x8x1xf32>
    %c0_23 = arith.constant 0 : index
    %c0_24 = arith.constant 0 : index
    %c0_25 = arith.constant 0 : index
    %39 = vector.load %arg11[%c0_23, %c0_24, %c0_25] : memref<2x8x1xf32, #tpu.memory_space<vmem>>, vector<2x8x1xf32>
    tpu.vector_store %arg11[%c0_23, %c0_24, %c0_25], %38 {strides = array<i32>} : memref<2x8x1xf32, #tpu.memory_space<vmem>>, vector<2x8x1xf32>,
    %c0_26 = arith.constant 0 : index
    %c0_27 = arith.constant 0 : index
    %c0_28 = arith.constant 0 : index
    %40 = vector.load %arg12[%c0_26, %c0_27, %c0_28] : memref<2x8x128xf32, #tpu.memory_space<vmem>>, vector<2x8x128xf32>
    %41 = vector.broadcast %30 : vector<2x8x1xf32> to vector<2x8x128xf32>
    %42 = arith.mulf %41, %40 : vector<2x8x128xf32>
    %43 = arith.truncf %33 : vector<2x8x8xf32> to vector<2x8x8xbf16>
    "tpu.trace_start"() <{level = 10 : i32, message = "bqk,bkd->bqd"}> : () -> ()
    %cst_29 = arith.constant dense<0.000000e+00> : vector<2x8x128xf32>
    %44 = tpu.matmul %43, %19, %cst_29 {dimension_numbers = #tpu.dot_dimension_numbers<[2], [1], [1], [2], [0, 0, 0, 1, 1, 2], [0], [0]>} : vector<2x8x8xbf16>, vector<2x8x128xbf16>, vector<2x8x128xf32> -> vector<2x8x128xf32>
    "tpu.trace_stop"() : () -> ()
    %45 = arith.addf %42, %44 : vector<2x8x128xf32>
    %c0_30 = arith.constant 0 : index
    %c0_31 = arith.constant 0 : index
    %c0_32 = arith.constant 0 : index
    %46 = vector.load %arg12[%c0_30, %c0_31, %c0_32] : memref<2x8x128xf32, #tpu.memory_space<vmem>>, vector<2x8x128xf32>
    tpu.vector_store %arg12[%c0_30, %c0_31, %c0_32], %45 {strides = array<i32>} : memref<2x8x128xf32, #tpu.memory_space<vmem>>, vector<2x8x128xf32>,
    %c0_33 = arith.constant 0 : index
    %c0_34 = arith.constant 0 : index
    %c0_35 = arith.constant 0 : index
    %47 = vector.load %arg10[%c0_33, %c0_34, %c0_35] : memref<2x8x1xf32, #tpu.memory_space<vmem>>, vector<2x8x1xf32>
    tpu.vector_store %arg10[%c0_33, %c0_34, %c0_35], %27 {strides = array<i32>} : memref<2x8x1xf32, #tpu.memory_space<vmem>>, vector<2x8x1xf32>,
    %c0_i32_36 = arith.constant 0 : i32
    %48 = arith.cmpi eq, %arg1, %c0_i32_36 : i32
    %49 = arith.extui %48 : i1 to i32
    %c0_i32_37 = arith.constant 0 : i32
    %50 = arith.cmpi ne, %49, %c0_i32_37 : i32
    scf.if %50 {
      %c0_38 = arith.constant 0 : index
      %c0_39 = arith.constant 0 : index
      %c0_40 = arith.constant 0 : index
      %51 = vector.load %arg12[%c0_38, %c0_39, %c0_40] : memref<2x8x128xf32, #tpu.memory_space<vmem>>, vector<2x8x128xf32>
      %c0_41 = arith.constant 0 : index
      %c0_42 = arith.constant 0 : index
      %c0_43 = arith.constant 0 : index
      %52 = vector.load %arg11[%c0_41, %c0_42, %c0_43] : memref<2x8x1xf32, #tpu.memory_space<vmem>>, vector<2x8x1xf32>
      %53 = tpu.reciprocal %52 {approx = true} : vector<2x8x1xf32> -> vector<2x8x1xf32>
      %54 = vector.broadcast %53 : vector<2x8x1xf32> to vector<2x8x128xf32>
      %55 = arith.mulf %51, %54 : vector<2x8x128xf32>
      %56 = vector.shape_cast %55 : vector<2x8x128xf32> to vector<16x128xf32>
      %57 = arith.truncf %56 : vector<16x128xf32> to vector<16x128xbf16>
      %c0_44 = arith.constant 0 : index
      %c0_45 = arith.constant 0 : index
      %c0_46 = arith.constant 0 : index
      %58 = vector.load %arg9[%c0_44, %c0_45, %c0_46] : memref<2x8x128xbf16, #tpu.memory_space<vmem>>, vector<2x8x128xbf16>
      %59 = vector.shape_cast %58 : vector<2x8x128xbf16> to vector<16x128xbf16>
      %c0_47 = arith.constant 0 : index
      %c0_48 = arith.constant 0 : index
      %60 = vector.load %arg6[%c0_47, %c0_48] : memref<256x256xbf16, #tpu.memory_space<vmem>>, vector<128x256xbf16>
      %cst_49 = arith.constant dense<0.000000e+00> : vector<16x256xf32>
      %61 = tpu.matmul %57, %60, %cst_49 {dimension_numbers = #tpu.dot_dimension_numbers<[1], [0], [0], [1], [0, 0, 1, 1], [], []>} : vector<16x128xbf16>, vector<128x256xbf16>, vector<16x256xf32> -> vector<16x256xf32>
      %c128 = arith.constant 128 : index
      %c0_50 = arith.constant 0 : index
      %62 = vector.load %arg6[%c128, %c0_50] : memref<256x256xbf16, #tpu.memory_space<vmem>>, vector<128x256xbf16>
      %cst_51 = arith.constant dense<0.000000e+00> : vector<16x256xf32>
      %63 = tpu.matmul %59, %62, %cst_51 {dimension_numbers = #tpu.dot_dimension_numbers<[1], [0], [0], [1], [0, 0, 1, 1], [], []>} : vector<16x128xbf16>, vector<128x256xbf16>, vector<16x256xf32> -> vector<16x256xf32>
      %64 = arith.addf %61, %63 : vector<16x256xf32>
      %65 = vector.extract_strided_slice %64 {offsets = [0, 0], sizes = [16, 128], strides = [1, 1]} : vector<16x256xf32> to vector<16x128xf32>
      %c3 = arith.constant 3 : index
      %c0_52 = arith.constant 0 : index
      %66 = vector.load %arg7[%c3, %c0_52] : memref<8x128xf32, #tpu.memory_space<vmem>>, vector<1x128xf32>
      %67 = vector.broadcast %66 : vector<1x128xf32> to vector<16x128xf32>
      %68 = arith.addf %65, %67 : vector<16x128xf32>
      %69 = vector.extract_strided_slice %64 {offsets = [0, 128], sizes = [16, 128], strides = [1, 1]} : vector<16x256xf32> to vector<16x128xf32>
      %c4 = arith.constant 4 : index
      %c0_53 = arith.constant 0 : index
      %70 = vector.load %arg7[%c4, %c0_53] : memref<8x128xf32, #tpu.memory_space<vmem>>, vector<1x128xf32>
      %71 = vector.broadcast %70 : vector<1x128xf32> to vector<16x128xf32>
      %72 = arith.addf %69, %71 : vector<16x128xf32>
      %73 = arith.negf %72 : vector<16x128xf32>
      %74 = math.exp %73 : vector<16x128xf32>
      %cst_54 = arith.constant 1.000000e+00 : f32
      %75 = vector.broadcast %cst_54 : f32 to vector<16x128xf32>
      %76 = arith.addf %75, %74 : vector<16x128xf32>
      %77 = arith.divf %75, %76 : vector<16x128xf32>
      %78 = arith.mulf %68, %77 : vector<16x128xf32>
      %cst_55 = arith.constant dense<0.000000e+00> : vector<16xf32>
      %79 = vector.multi_reduction <add>, %78, %cst_55 [1] : vector<16x128xf32> to vector<16xf32>
      %80 = vector.shape_cast %79 : vector<16xf32> to vector<16x1xf32>
      %cst_56 = arith.constant 3.125000e-02 : f32
      %81 = vector.broadcast %cst_56 : f32 to vector<16x1xf32>
      %82 = arith.mulf %80, %81 : vector<16x1xf32>
      %83 = tpu.iota {dimensions = array<i32: 1>} : vector<16x128xi32>
      %c32_i32 = arith.constant 32 : i32
      %84 = vector.broadcast %c32_i32 : i32 to vector<16x128xi32>
      %85 = arith.cmpi slt, %83, %84 : vector<16x128xi32>
      %86 = vector.broadcast %82 : vector<16x1xf32> to vector<16x128xf32>
      %87 = arith.subf %78, %86 : vector<16x128xf32>
      %cst_57 = arith.constant 0.000000e+00 : f32
      %88 = vector.broadcast %cst_57 : f32 to vector<16x128xf32>
      %89 = arith.select %85, %87, %88 : vector<16x128xi1>, vector<16x128xf32>
      %90 = arith.mulf %89, %89 : vector<16x128xf32>
      %cst_58 = arith.constant dense<0.000000e+00> : vector<16xf32>
      %91 = vector.multi_reduction <add>, %90, %cst_58 [1] : vector<16x128xf32> to vector<16xf32>
      %92 = vector.shape_cast %91 : vector<16xf32> to vector<16x1xf32>
      %cst_59 = arith.constant 3.125000e-02 : f32
      %93 = vector.broadcast %cst_59 : f32 to vector<16x1xf32>
      %94 = arith.mulf %92, %93 : vector<16x1xf32>
      %cst_60 = arith.constant 9.99999974E-6 : f32
      %95 = vector.broadcast %cst_60 : f32 to vector<16x1xf32>
      %96 = arith.addf %94, %95 : vector<16x1xf32>
      %97 = math.rsqrt %96 : vector<16x1xf32>
      %98 = vector.broadcast %97 : vector<16x1xf32> to vector<16x128xf32>
      %99 = arith.mulf %89, %98 : vector<16x128xf32>
      %c5 = arith.constant 5 : index
      %c0_61 = arith.constant 0 : index
      %100 = vector.load %arg7[%c5, %c0_61] : memref<8x128xf32, #tpu.memory_space<vmem>>, vector<1x128xf32>
      %101 = vector.broadcast %100 : vector<1x128xf32> to vector<16x128xf32>
      %102 = arith.mulf %99, %101 : vector<16x128xf32>
      %c6 = arith.constant 6 : index
      %c0_62 = arith.constant 0 : index
      %103 = vector.load %arg7[%c6, %c0_62] : memref<8x128xf32, #tpu.memory_space<vmem>>, vector<1x128xf32>
      %104 = vector.broadcast %103 : vector<1x128xf32> to vector<16x128xf32>
      %105 = arith.addf %102, %104 : vector<16x128xf32>
      %cst_63 = arith.constant 0.000000e+00 : f32
      %106 = vector.broadcast %cst_63 : f32 to vector<16x128xf32>
      %107 = arith.maximumf %105, %106 : vector<16x128xf32>
      %108 = vector.shape_cast %107 : vector<16x128xf32> to vector<2x8x128xf32>
      %c0_64 = arith.constant 0 : index
      %c0_65 = arith.constant 0 : index
      %c0_66 = arith.constant 0 : index
      %109 = vector.load %arg8[%c0_64, %c0_65, %c0_66] : memref<2x8x128xf32, #tpu.memory_space<vmem>>, vector<2x8x128xf32>
      tpu.vector_store %arg8[%c0_64, %c0_65, %c0_66], %108 {strides = array<i32>} : memref<2x8x128xf32, #tpu.memory_space<vmem>>, vector<2x8x128xf32>,
    } else {
    }
    return
  }
  func.func @transform_0(%arg0: i32, %arg1: i32) -> (i32, i32, i32) {
    %c0_i32 = arith.constant 0 : i32
    %c0_i32_0 = arith.constant 0 : i32
    %c0_i32_1 = arith.constant 0 : i32
    return %arg0, %c0_i32, %c0_i32_0 : i32, i32, i32
  }
  func.func @transform_1(%arg0: i32, %arg1: i32) -> (i32, i32, i32) {
    %c0_i32 = arith.constant 0 : i32
    %c0_i32_0 = arith.constant 0 : i32
    return %arg0, %arg1, %c0_i32 : i32, i32, i32
  }
  func.func @transform_2(%arg0: i32, %arg1: i32) -> (i32, i32) {
    %c0_i32 = arith.constant 0 : i32
    %c0_i32_0 = arith.constant 0 : i32
    %c0_i32_1 = arith.constant 0 : i32
    return %c0_i32, %c0_i32_0 : i32, i32
  }
  func.func @transform_3(%arg0: i32, %arg1: i32) -> (i32, i32) {
    %c0_i32 = arith.constant 0 : i32
    %c0_i32_0 = arith.constant 0 : i32
    %c0_i32_1 = arith.constant 0 : i32
    return %c0_i32, %c0_i32_0 : i32, i32
  }
  func.func @transform_4(%arg0: i32, %arg1: i32) -> (i32, i32) {
    %c0_i32 = arith.constant 0 : i32
    %c0_i32_0 = arith.constant 0 : i32
    %c0_i32_1 = arith.constant 0 : i32
    return %c0_i32, %c0_i32_0 : i32, i32
  }
  func.func @transform_5(%arg0: i32, %arg1: i32) -> (i32, i32) {
    %c0_i32 = arith.constant 0 : i32
    %c0_i32_0 = arith.constant 0 : i32
    %c0_i32_1 = arith.constant 0 : i32
    return %c0_i32, %c0_i32_0 : i32, i32
  }
  func.func @transform_6(%arg0: i32, %arg1: i32) -> (i32, i32, i32) {
    %c0_i32 = arith.constant 0 : i32
    %c0_i32_0 = arith.constant 0 : i32
    %c0_i32_1 = arith.constant 0 : i32
    return %arg0, %c0_i32, %c0_i32_0 : i32, i32, i32
  }
}

</mosaic_0001>

<llo_original>
// kernel: tpu_custom_call.1
$region0: #{tpu_custom_call.1}
  #allocation0 [shape = 'u32[]', space=smem, size = 0x4, offset = 0x4, fixed_abs, tag = 'smem constant byte address 0x4 - core index']
  #allocation1 [shape = 'u32[144,128]{1,0:T(1,128)}', space=vmem, size = 0x12000, scoped, tag = 'internal scratch']
  #allocation2 [shape = 'bf16[2,8,128]{2,1,0:T(8,128)(2,1)}', space=vmem, size = 0x1000, scoped, tag = 'scratch operand']
  #allocation3 [shape = 'f32[2,8,1]{2,1,0:T(8,128)}', space=vmem, size = 0x2000, scoped, tag = 'scratch operand']
  #allocation4 [shape = 'f32[2,8,1]{2,1,0:T(8,128)}', space=vmem, size = 0x2000, scoped, tag = 'scratch operand']
  #allocation5 [shape = 'f32[2,8,128]{2,1,0:T(8,128)}', space=vmem, size = 0x2000, scoped, tag = 'scratch operand']
  %s0 = inlined_call_operand.hbm [shape: f32[2,8,128], index: 0, kind: input, shape index: {}]
  %s1 = inlined_call_operand.hbm [shape: f32[2,8,128], index: 1, kind: input, shape index: {}]
  %s2 = inlined_call_operand.hbm [shape: bf16[128,128], index: 2, kind: input, shape index: {}]
  %s3 = inlined_call_operand.hbm [shape: bf16[128,256], index: 3, kind: input, shape index: {}]
  %s4 = inlined_call_operand.hbm [shape: bf16[256,256], index: 4, kind: input, shape index: {}]
  %s5 = inlined_call_operand.vmem [shape: f32[8,128], index: 5, kind: input, shape index: {}]
  %s6 = inlined_call_operand.hbm [shape: f32[2,8,128], index: 6, kind: output, shape index: {}]
  %s7 = sld [smem:[#allocation0]]
  $region62: #{tpu_custom_call.1} parent=0
    _
  %s9 = ssub.s32 1, %s7
  %s10 = scalar_select 0, %s9, %s7
  $region1: #{tpu_custom_call.1} parent=0
    #allocation6 [shape = 'u8[8192]{0}', space=vmem, size = 0x2000, scoped, tag = 'input window, operand 0, single buffered']
    #allocation7 [shape = 's32[1]{0}', space=sflag, size = 0x4, scoped, tag = 'scoped memory for tpu_custom_call.1']
    #allocation8 [shape = 's32[1]{0}', space=sflag, size = 0x4, scoped, tag = 'scoped memory for tpu_custom_call.1']
    #allocation9 [shape = 'u8[8192]{0}', space=vmem, size = 0x2000, scoped, tag = 'input window, operand 1, single buffered']
    #allocation10 [shape = 's32[1]{0}', space=sflag, size = 0x4, scoped, tag = 'scoped memory for tpu_custom_call.1']
    #allocation11 [shape = 'u8[32768]{0}', space=vmem, size = 0x8000, scoped, tag = 'input window, operand 2, single buffered']
    #allocation12 [shape = 'u8[65536]{0}', space=vmem, size = 0x10000, scoped, tag = 'input window, operand 3, single buffered']
    #allocation13 [shape = 's32[1]{0}', space=sflag, size = 0x4, scoped, tag = 'scoped memory for tpu_custom_call.1']
    #allocation14 [shape = 'u8[131072]{0}', space=vmem, size = 0x20000, scoped, tag = 'input window, operand 4, single buffered']
    #allocation15 [shape = 'u8[8192]{0}', space=vmem, size = 0x2000, scoped, tag = 'output window, operand 0, single buffered']
    %11 = vsyncpa [#allocation7], 0
    %12 = vsyncpa [#allocation10], 0
    %13 = vsyncpa [#allocation13], 0
    %14 = vsyncpa [#allocation8], 0
    // Predicated region
    $region2: #{tpu_custom_call.1} parent=1 // pred_check
      _
    $region3: #{tpu_custom_call.1} parent=1 // pred_check_branch
      %16 = sbr.rel (0) target = $region5
    $region4: #{tpu_custom_call.1} parent=1 // pred_region
      %s18 = ssub.s32 256, 256
      %19 = vsyncadd [#allocation7], %s18
      %s20 = sshll.u32 [#allocation6], 4
      %s21 = int_to_ptr.vmem [resolvable:$true] %s20
      %26 = dma.hbm_to_vmem [thread:$0]  %s0, 256, %s21, [#allocation7], 128, 128, 8
    $region5: #{tpu_custom_call.1} parent=1 // pred_fallthru
      _
    // Predicated region
    $region6: #{tpu_custom_call.1} parent=1 // pred_check
      _
    $region7: #{tpu_custom_call.1} parent=1 // pred_check_branch
      %28 = sbr.rel (0) target = $region9
    $region8: #{tpu_custom_call.1} parent=1 // pred_region
      %s30 = ssub.s32 256, 256
      %31 = vsyncadd [#allocation10], %s30
      %s32 = sshll.u32 [#allocation9], 4
      %s33 = int_to_ptr.vmem [resolvable:$true] %s32
      %38 = dma.hbm_to_vmem [thread:$0]  %s1, 256, %s33, [#allocation10], 128, 128, 8
    $region9: #{tpu_custom_call.1} parent=1 // pred_fallthru
      _
    // Predicated region
    $region10: #{tpu_custom_call.1} parent=1 // pred_check
      _
    $region11: #{tpu_custom_call.1} parent=1 // pred_check_branch
      %40 = sbr.rel (0) target = $region13
    $region12: #{tpu_custom_call.1} parent=1 // pred_region
      %s42 = ssub.s32 1024, 1024
      %43 = vsyncadd [#allocation10], %s42
      %s44 = sshll.u32 [#allocation11], 4
      %s45 = int_to_ptr.vmem [resolvable:$true] %s44
      %50 = dma.hbm_to_vmem [thread:$0]  %s2, 1024, %s45, [#allocation10], 64, 64, 4
    $region13: #{tpu_custom_call.1} parent=1 // pred_fallthru
      _
    // Predicated region
    $region14: #{tpu_custom_call.1} parent=1 // pred_check
      _
    $region15: #{tpu_custom_call.1} parent=1 // pred_check_branch
      %52 = sbr.rel (0) target = $region17
    $region16: #{tpu_custom_call.1} parent=1 // pred_region
      %s54 = ssub.s32 2048, 2048
      %55 = vsyncadd [#allocation13], %s54
      %s56 = sshll.u32 [#allocation12], 4
      %s57 = int_to_ptr.vmem [resolvable:$true] %s56
      %62 = dma.hbm_to_vmem [thread:$0]  %s3, 2048, %s57, [#allocation13], 128, 128, 8
    $region17: #{tpu_custom_call.1} parent=1 // pred_fallthru
      _
    // Predicated region
    $region18: #{tpu_custom_call.1} parent=1 // pred_check
      _
    $region19: #{tpu_custom_call.1} parent=1 // pred_check_branch
      %64 = sbr.rel (0) target = $region21
    $region20: #{tpu_custom_call.1} parent=1 // pred_region
      %s66 = ssub.s32 4096, 4096
      %67 = vsyncadd [#allocation13], %s66
      %s68 = sshll.u32 [#allocation14], 4
      %s69 = int_to_ptr.vmem [resolvable:$true] %s68
      %74 = dma.hbm_to_vmem [thread:$0]  %s4, 4096, %s69, [#allocation13], 128, 128, 8
    $region21: #{tpu_custom_call.1} parent=1 // pred_fallthru
      _
    // Predicated region
    $region22: #{tpu_custom_call.1} parent=1 // pred_check
      _
    $region23: #{tpu_custom_call.1} parent=1 // pred_check_branch
      %76 = sbr.rel (0) target = $region25
    $region24: #{tpu_custom_call.1} parent=1 // pred_region
      _
    $region25: #{tpu_custom_call.1} parent=1 // pred_fallthru
      _
    // Predicated region
    $region26: #{tpu_custom_call.1} parent=1 // pred_check
      _
    $region27: #{tpu_custom_call.1} parent=1 // pred_check_branch
      %78 = sbr.rel (0) target = $region29
    $region28: #{tpu_custom_call.1} parent=1 // pred_region
      %79 = dma.done [#allocation7], 256
    $region29: #{tpu_custom_call.1} parent=1 // pred_fallthru
      _
    // Predicated region
    $region30: #{tpu_custom_call.1} parent=1 // pred_check
      _
    $region31: #{tpu_custom_call.1} parent=1 // pred_check_branch
      %81 = sbr.rel (0) target = $region33
    $region32: #{tpu_custom_call.1} parent=1 // pred_region
      %82 = dma.done [#allocation10], 256
    $region33: #{tpu_custom_call.1} parent=1 // pred_fallthru
      _
    // Predicated region
    $region34: #{tpu_custom_call.1} parent=1 // pred_check
      _
    $region35: #{tpu_custom_call.1} parent=1 // pred_check_branch
      %84 = sbr.rel (0) target = $region37
    $region36: #{tpu_custom_call.1} parent=1 // pred_region
      %85 = dma.done [#allocation10], 1024
    $region37: #{tpu_custom_call.1} parent=1 // pred_fallthru
      _
    // Predicated region
    $region38: #{tpu_custom_call.1} parent=1 // pred_check
      _
    $region39: #{tpu_custom_call.1} parent=1 // pred_check_branch
      %87 = sbr.rel (0) target = $region41
    $region40: #{tpu_custom_call.1} parent=1 // pred_region
      %88 = dma.done [#allocation13], 2048
    $region41: #{tpu_custom_call.1} parent=1 // pred_fallthru
      _
    // Predicated region
    $region42: #{tpu_custom_call.1} parent=1 // pred_check
      _
    $region43: #{tpu_custom_call.1} parent=1 // pred_check_branch
      %90 = sbr.rel (0) target = $region45
    $region44: #{tpu_custom_call.1} parent=1 // pred_region
      %91 = dma.done [#allocation13], 4096
    $region45: #{tpu_custom_call.1} parent=1 // pred_fallthru
      _
    %p93 = scmp.eq.s32.totalorder 0, 0
    // Predicated region
    $region46: #{tpu_custom_call.1} parent=1 // pred_check
      %p94 = pneg %p93
    $region47: #{tpu_custom_call.1} parent=1 // pred_check_branch
      %96 = sbr.rel (%p94) target = $region49
    $region48: #{tpu_custom_call.1} parent=1 // pred_region
      %v97 = vld [vmem:[#allocation6] sm:$0xff]
      %v98 = vld [vmem:[#allocation6 + $0x8] sm:$0xff]
      %v99 = vpack.c.bf16 %v97, %v97
      %v100 = vpack.c.bf16 %v98, %v98
      %v101 = vld [vmem:[#allocation11] sm:$0xf]
      %v102 = vld [vmem:[#allocation11 + $0x4] sm:$0xf]
      %v103 = vld [vmem:[#allocation11 + $0x8] sm:$0xf]
      %v104 = vld [vmem:[#allocation11 + $0xc] sm:$0xf]
      %v105 = vld [vmem:[#allocation11 + $0x10] sm:$0xf]
      %v106 = vld [vmem:[#allocation11 + $0x14] sm:$0xf]
      %v107 = vld [vmem:[#allocation11 + $0x18] sm:$0xf]
      %v108 = vld [vmem:[#allocation11 + $0x1c] sm:$0xf]
      %v109 = vld [vmem:[#allocation11 + $0x20] sm:$0xf]
      %v110 = vld [vmem:[#allocation11 + $0x24] sm:$0xf]
      %v111 = vld [vmem:[#allocation11 + $0x28] sm:$0xf]
      %v112 = vld [vmem:[#allocation11 + $0x2c] sm:$0xf]
      %v113 = vld [vmem:[#allocation11 + $0x30] sm:$0xf]
      %v114 = vld [vmem:[#allocation11 + $0x34] sm:$0xf]
      %v115 = vld [vmem:[#allocation11 + $0x38] sm:$0xf]
      %v116 = vld [vmem:[#allocation11 + $0x3c] sm:$0xf]
      %v117 = vld [vmem:[%s5] sm:$0x1]
      %v118 = vlaneseq
      %v119 = vshrl.u32 %v118, 7
      %v120 = vsub.s32 0, %v119
      %v121 = vrot.slane %v117, %v120
      %v124 = vunpack.c.l.b16 %v99
      %v125 = vunpack.c.l.b16 %v100
      %v126 = vpack.c.b16 %v125, %v124
      %v144 = vunpack.c.l.b16 %v101
      %v145 = vunpack.c.l.b16 %v102
      %v146 = vunpack.c.l.b16 %v103
      %v147 = vunpack.c.l.b16 %v104
      %v148 = vunpack.c.l.b16 %v105
      %v149 = vunpack.c.l.b16 %v106
      %v150 = vunpack.c.l.b16 %v107
      %v151 = vunpack.c.l.b16 %v108
      %v152 = vunpack.c.l.b16 %v109
      %v153 = vunpack.c.l.b16 %v110
      %v154 = vunpack.c.l.b16 %v111
      %v155 = vunpack.c.l.b16 %v112
      %v156 = vunpack.c.l.b16 %v113
      %v157 = vunpack.c.l.b16 %v114
      %v158 = vunpack.c.l.b16 %v115
      %v159 = vunpack.c.l.b16 %v116
      %v160 = vpack.c.b16 %v145, %v144
      %v161 = vpack.c.b16 %v147, %v146
      %v162 = vpack.c.b16 %v149, %v148
      %v163 = vpack.c.b16 %v151, %v150
      %v164 = vpack.c.b16 %v153, %v152
      %v165 = vpack.c.b16 %v155, %v154
      %v166 = vpack.c.b16 %v157, %v156
      %v167 = vpack.c.b16 %v159, %v158
      %176 = vmatprep.subr.bf16.mxu0 0
      %177 = vmatpush1.bf16.msra.mxu0 %v167
      %178 = vmatprep.subr.bf16.mxu0 0
      %179 = vmatpush1.bf16.msra.mxu0 %v166
      %180 = vmatprep.subr.bf16.mxu0 0
      %181 = vmatpush1.bf16.msra.mxu0 %v165
      %182 = vmatprep.subr.bf16.mxu0 0
      %183 = vmatpush1.bf16.msra.mxu0 %v164
      %184 = vmatprep.subr.bf16.mxu0 0
      %185 = vmatpush1.bf16.msra.mxu0 %v163
      %186 = vmatprep.subr.bf16.mxu0 0
      %187 = vmatpush1.bf16.msra.mxu0 %v162
      %188 = vmatprep.subr.bf16.mxu0 0
      %189 = vmatpush1.bf16.msra.mxu0 %v161
      %190 = vmatprep.subr.bf16.mxu0 0
      %191 = vmatpush1.bf16.msra.mxu0 %v160
      %192 = vmatprep.subr.bf16.mxu0 0
      %193 = vmatpush2.bf16.msra.mxu0 0
      %194 = vmatprep.subr.bf16.mxu0 0
      %195 = vmatpush2.bf16.msra.mxu0 0
      %196 = vmatprep.subr.bf16.mxu0 0
      %197 = vmatpush2.bf16.msra.mxu0 0
      %198 = vmatprep.subr.bf16.mxu0 0
      %199 = vmatpush2.bf16.msra.mxu0 0
      %200 = vmatprep.subr.bf16.mxu0 0
      %201 = vmatpush2.bf16.msra.mxu0 0
      %202 = vmatprep.subr.bf16.mxu0 0
      %203 = vmatpush2.bf16.msra.mxu0 0
      %204 = vmatprep.subr.bf16.mxu0 0
      %205 = vmatpush2.bf16.msra.mxu0 0
      %206 = vmatprep.subr.bf16.mxu0 0
      %207 = vmatpush2.bf16.msra.mxu0 0
      %208 = vmatprep.mubr.bf16.mxu0 0
      %209 = vmatmul.mubr.bf16.gmra.mxu0 %v126
      %v210 = vpop.f32.mrf.mxu0
      %v211 = vadd.f32 %v121, %v210
      %v212 = vpop.f32.mrf.mxu0
      %v213 = vpop.f32.mrf.mxu0
      %v214 = vadd.f32 %v121, %v213
      %v215 = vpop.f32.mrf.mxu0
      %216 = vdwg.mxu0
      %v217 = vpack.c.bf16 %v211, %v211
      %v218 = vpack.c.bf16 %v214, %v214
      %219 = vst [vmem:[#allocation2] sm:$0xf] %v217
      %220 = vst [vmem:[#allocation2 + $0x4] sm:$0xf] %v218
      %vm221 = vcmask 7168
      %222 = vst.msk [vmem:[#allocation3] sm:$0xff] %vm221, -inf
      %223 = vst.msk [vmem:[#allocation3 + $0x8] sm:$0xff] %vm221, -inf
      %224 = vst.msk [vmem:[#allocation4] sm:$0xff] %vm221, 0.0
      %225 = vst.msk [vmem:[#allocation4 + $0x8] sm:$0xff] %vm221, 0.0
      %226 = vst [vmem:[#allocation5] sm:$0xff] 0.0
      %227 = vst [vmem:[#allocation5 + $0x8] sm:$0xff] 0.0
    $region49: #{tpu_custom_call.1} parent=1 // pred_fallthru
      _
    %v228 = vld [vmem:[#allocation9] sm:$0xff]
    %v229 = vld [vmem:[#allocation9 + $0x8] sm:$0xff]
    %v230 = vpack.c.bf16 %v228, %v228
    %v231 = vpack.c.bf16 %v229, %v229
    %v232 = vld [vmem:[#allocation12] sm:$0xff]
    %v233 = vld [vmem:[#allocation12 + $0x8] sm:$0xff]
    %v234 = vld [vmem:[#allocation12 + $0x10] sm:$0xff]
    %v235 = vld [vmem:[#allocation12 + $0x18] sm:$0xff]
    %v236 = vld [vmem:[#allocation12 + $0x20] sm:$0xff]
    %v237 = vld [vmem:[#allocation12 + $0x28] sm:$0xff]
    %v238 = vld [vmem:[#allocation12 + $0x30] sm:$0xff]
    %v239 = vld [vmem:[#allocation12 + $0x38] sm:$0xff]
    %v240 = vld [vmem:[#allocation12 + $0x40] sm:$0xff]
    %v241 = vld [vmem:[#allocation12 + $0x48] sm:$0xff]
    %v242 = vld [vmem:[#allocation12 + $0x50] sm:$0xff]
    %v243 = vld [vmem:[#allocation12 + $0x58] sm:$0xff]
    %v244 = vld [vmem:[#allocation12 + $0x60] sm:$0xff]
    %v245 = vld [vmem:[#allocation12 + $0x68] sm:$0xff]
    %v246 = vld [vmem:[#allocation12 + $0x70] sm:$0xff]
    %v247 = vld [vmem:[#allocation12 + $0x78] sm:$0xff]
    %v250 = vunpack.c.l.b16 %v230
    %v251 = vunpack.c.l.b16 %v231
    %v252 = vpack.c.b16 %v251, %v250
    %v270 = vunpack.c.l.b16 %v232
    %v271 = vunpack.c.h.b16 %v232
    %v272 = vunpack.c.l.b16 %v233
    %v273 = vunpack.c.h.b16 %v233
    %v274 = vunpack.c.l.b16 %v234
    %v275 = vunpack.c.h.b16 %v234
    %v276 = vunpack.c.l.b16 %v235
    %v277 = vunpack.c.h.b16 %v235
    %v278 = vunpack.c.l.b16 %v236
    %v279 = vunpack.c.h.b16 %v236
    %v280 = vunpack.c.l.b16 %v237
    %v281 = vunpack.c.h.b16 %v237
    %v282 = vunpack.c.l.b16 %v238
    %v283 = vunpack.c.h.b16 %v238
    %v284 = vunpack.c.l.b16 %v239
    %v285 = vunpack.c.h.b16 %v239
    %v286 = vunpack.c.l.b16 %v240
    %v287 = vunpack.c.h.b16 %v240
    %v288 = vunpack.c.l.b16 %v241
    %v289 = vunpack.c.h.b16 %v241
    %v290 = vunpack.c.l.b16 %v242
    %v291 = vunpack.c.h.b16 %v242
    %v292 = vunpack.c.l.b16 %v243
    %v293 = vunpack.c.h.b16 %v243
    %v294 = vunpack.c.l.b16 %v244
    %v295 = vunpack.c.h.b16 %v244
    %v296 = vunpack.c.l.b16 %v245
    %v297 = vunpack.c.h.b16 %v245
    %v298 = vunpack.c.l.b16 %v246
    %v299 = vunpack.c.h.b16 %v246
    %v300 = vunpack.c.l.b16 %v247
    %v301 = vunpack.c.h.b16 %v247
    %v302 = vpack.c.b16 %v272, %v270
    %v303 = vpack.c.b16 %v273, %v271
    %v304 = vpack.c.b16 %v276, %v274
    %v305 = vpack.c.b16 %v277, %v275
    %v306 = vpack.c.b16 %v280, %v278
    %v307 = vpack.c.b16 %v281, %v279
    %v308 = vpack.c.b16 %v284, %v282
    %v309 = vpack.c.b16 %v285, %v283
    %v310 = vpack.c.b16 %v288, %v286
    %v311 = vpack.c.b16 %v289, %v287
    %v312 = vpack.c.b16 %v292, %v290
    %v313 = vpack.c.b16 %v293, %v291
    %v314 = vpack.c.b16 %v296, %v294
    %v315 = vpack.c.b16 %v297, %v295
    %v316 = vpack.c.b16 %v300, %v298
    %v317 = vpack.c.b16 %v301, %v299
    %334 = vmatprep.subr.bf16.mxu0 %v317
    %335 = vmatpush1.bf16.msra.mxu0 %v316
    %336 = vmatprep.subr.bf16.mxu0 %v315
    %337 = vmatpush1.bf16.msra.mxu0 %v314
    %338 = vmatprep.subr.bf16.mxu0 %v313
    %339 = vmatpush1.bf16.msra.mxu0 %v312
    %340 = vmatprep.subr.bf16.mxu0 %v311
    %341 = vmatpush1.bf16.msra.mxu0 %v310
    %342 = vmatprep.subr.bf16.mxu0 %v309
    %343 = vmatpush1.bf16.msra.mxu0 %v308
    %344 = vmatprep.subr.bf16.mxu0 %v307
    %345 = vmatpush1.bf16.msra.mxu0 %v306
    %346 = vmatprep.subr.bf16.mxu0 %v305
    %347 = vmatpush1.bf16.msra.mxu0 %v304
    %348 = vmatprep.subr.bf16.mxu0 %v303
    %349 = vmatpush1.bf16.msra.mxu0 %v302
    %350 = vmatprep.subr.bf16.mxu0 0
    %351 = vmatpush2.bf16.msra.mxu0 0
    %352 = vmatprep.subr.bf16.mxu0 0
    %353 = vmatpush2.bf16.msra.mxu0 0
    %354 = vmatprep.subr.bf16.mxu0 0
    %355 = vmatpush2.bf16.msra.mxu0 0
    %356 = vmatprep.subr.bf16.mxu0 0
    %357 = vmatpush2.bf16.msra.mxu0 0
    %358 = vmatprep.subr.bf16.mxu0 0
    %359 = vmatpush2.bf16.msra.mxu0 0
    %360 = vmatprep.subr.bf16.mxu0 0
    %361 = vmatpush2.bf16.msra.mxu0 0
    %362 = vmatprep.subr.bf16.mxu0 0
    %363 = vmatpush2.bf16.msra.mxu0 0
    %364 = vmatprep.subr.bf16.mxu0 0
    %365 = vmatpush2.bf16.msra.mxu0 0
    %366 = vmatprep.mubr.bf16.mxu0 0
    %367 = vmatmul.mubr.bf16.gmra.mxu0 %v252
    %v368 = vpop.f32.mrf.mxu0
    %v369 = vadd.f32 0.0, %v368
    %v370 = vpop.f32.mrf.mxu0
    %v371 = vadd.f32 0.0, %v370
    %v372 = vpop.f32.mrf.mxu0
    %v373 = vadd.f32 0.0, %v372
    %v374 = vpop.f32.mrf.mxu0
    %v375 = vadd.f32 0.0, %v374
    %376 = vdwg.mxu0
    %v377 = vld [vmem:[%s5 + $0x1] sm:$0x1]
    %v378 = vlaneseq
    %v379 = vshrl.u32 %v378, 7
    %v380 = vsub.s32 0, %v379
    %v381 = vrot.slane %v377, %v380
    %v382 = vadd.f32 %v369, %v381
    %v383 = vadd.f32 %v373, %v381
    %v384 = vpack.c.bf16 %v383, %v382
    %v386 = vunpack.c.l.b16 %v384
    %v387 = vunpack.c.h.b16 %v384
    %v388 = vpack.c.b16 %v386, %v386
    %v389 = vpack.c.b16 %v387, %v387
    %v392 = vld [vmem:[%s5 + $0x2] sm:$0x1]
    %v393 = vlaneseq
    %v394 = vshrl.u32 %v393, 7
    %v395 = vsub.s32 0, %v394
    %v396 = vrot.slane %v392, %v395
    %v397 = vadd.f32 %v371, %v396
    %v398 = vadd.f32 %v375, %v396
    %v399 = vpack.c.bf16 %v398, %v397
    %v401 = vunpack.c.l.b16 %v399
    %v402 = vunpack.c.h.b16 %v399
    %v403 = vpack.c.b16 %v401, %v401
    %v404 = vpack.c.b16 %v402, %v402
    %v405 = vld [vmem:[#allocation2] sm:$0xf]
    %v406 = vld [vmem:[#allocation2 + $0x4] sm:$0xf]
    %407 = vmatprep.subr.bf16.mxu0 0
    %408 = vmatpush1.bf16.xpose.msra.mxu0 0
    %409 = vmatprep.subr.bf16.mxu0 0
    %410 = vmatpush1.bf16.xpose.msra.mxu0 0
    %411 = vmatprep.subr.bf16.mxu0 0
    %412 = vmatpush1.bf16.xpose.msra.mxu0 0
    %413 = vmatprep.subr.bf16.mxu0 0
    %414 = vmatpush1.bf16.xpose.msra.mxu0 0
    %415 = vmatprep.subr.bf16.mxu0 0
    %416 = vmatpush1.bf16.xpose.msra.mxu0 0
    %417 = vmatprep.subr.bf16.mxu0 0
    %418 = vmatpush1.bf16.xpose.msra.mxu0 0
    %419 = vmatprep.subr.bf16.mxu0 0
    %420 = vmatpush1.bf16.xpose.msra.mxu0 0
    %421 = vmatprep.subr.bf16.mxu0 0
    %422 = vmatpush1.bf16.xpose.msra.mxu0 %v388
    %423 = vmatprep.subr.bf16.mxu0 0
    %424 = vmatpush2.bf16.xpose.msra.mxu0 0
    %425 = vmatprep.subr.bf16.mxu0 0
    %426 = vmatpush2.bf16.xpose.msra.mxu0 0
    %427 = vmatprep.subr.bf16.mxu0 0
    %428 = vmatpush2.bf16.xpose.msra.mxu0 0
    %429 = vmatprep.subr.bf16.mxu0 0
    %430 = vmatpush2.bf16.xpose.msra.mxu0 0
    %431 = vmatprep.subr.bf16.mxu0 0
    %432 = vmatpush2.bf16.xpose.msra.mxu0 0
    %433 = vmatprep.subr.bf16.mxu0 0
    %434 = vmatpush2.bf16.xpose.msra.mxu0 0
    %435 = vmatprep.subr.bf16.mxu0 0
    %436 = vmatpush2.bf16.xpose.msra.mxu0 0
    %437 = vmatprep.subr.bf16.mxu0 0
    %438 = vmatpush2.bf16.xpose.msra.mxu0 0
    %439 = vmatprep.mubr.bf16.mxu0 0
    %440 = vmatmul.mubr.bf16.gmra.mxu0 %v405
    %v441 = vpop.f32.mrf.mxu0
    %v442 = vadd.f32 0.0, %v441
    %v443 = vpop.f32.mrf.mxu0
    %v444 = vpop.f32.mrf.mxu0
    %v445 = vpop.f32.mrf.mxu0
    %446 = vdwg.mxu0
    %447 = vmatprep.subr.bf16.mxu0 0
    %448 = vmatpush1.bf16.xpose.msra.mxu0 0
    %449 = vmatprep.subr.bf16.mxu0 0
    %450 = vmatpush1.bf16.xpose.msra.mxu0 0
    %451 = vmatprep.subr.bf16.mxu0 0
    %452 = vmatpush1.bf16.xpose.msra.mxu0 0
    %453 = vmatprep.subr.bf16.mxu0 0
    %454 = vmatpush1.bf16.xpose.msra.mxu0 0
    %455 = vmatprep.subr.bf16.mxu0 0
    %456 = vmatpush1.bf16.xpose.msra.mxu0 0
    %457 = vmatprep.subr.bf16.mxu0 0
    %458 = vmatpush1.bf16.xpose.msra.mxu0 0
    %459 = vmatprep.subr.bf16.mxu0 0
    %460 = vmatpush1.bf16.xpose.msra.mxu0 0
    %461 = vmatprep.subr.bf16.mxu0 0
    %462 = vmatpush1.bf16.xpose.msra.mxu0 %v389
    %463 = vmatprep.subr.bf16.mxu0 0
    %464 = vmatpush2.bf16.xpose.msra.mxu0 0
    %465 = vmatprep.subr.bf16.mxu0 0
    %466 = vmatpush2.bf16.xpose.msra.mxu0 0
    %467 = vmatprep.subr.bf16.mxu0 0
    %468 = vmatpush2.bf16.xpose.msra.mxu0 0
    %469 = vmatprep.subr.bf16.mxu0 0
    %470 = vmatpush2.bf16.xpose.msra.mxu0 0
    %471 = vmatprep.subr.bf16.mxu0 0
    %472 = vmatpush2.bf16.xpose.msra.mxu0 0
    %473 = vmatprep.subr.bf16.mxu0 0
    %474 = vmatpush2.bf16.xpose.msra.mxu0 0
    %475 = vmatprep.subr.bf16.mxu0 0
    %476 = vmatpush2.bf16.xpose.msra.mxu0 0
    %477 = vmatprep.subr.bf16.mxu0 0
    %478 = vmatpush2.bf16.xpose.msra.mxu0 0
    %479 = vmatprep.mubr.bf16.mxu0 0
    %480 = vmatmul.mubr.bf16.gmra.mxu0 %v406
    %v481 = vpop.f32.mrf.mxu0
    %v482 = vadd.f32 0.0, %v481
    %v483 = vpop.f32.mrf.mxu0
    %v484 = vpop.f32.mrf.mxu0
    %v485 = vpop.f32.mrf.mxu0
    %486 = vdwg.mxu0
    %v487 = vmul.f32 %v442, 0.17677669
    %v488 = vmul.f32 %v482, 0.17677669
    %v489 = vld [vmem:[#allocation3] sm:$0xff]
    %v490 = vld [vmem:[#allocation3 + $0x8] sm:$0xff]
    %vm491 = vcmask 64512
    %v492 = vsel %vm491, %v487, -inf
    %493 = vmax.xlane.f32.xlu0 %v492
    %v494 = vpop.xlane.xlu0 %493
    %v495 = vsel %vm491, %v488, -inf
    %496 = vmax.xlane.f32.xlu0 %v495
    %v497 = vpop.xlane.xlu0 %496
    %v498 = vmax.f32 %v489, %v494
    %v499 = vmax.f32 %v490, %v497
    %v500 = vsub.f32 %v489, %v498
    %v501 = vsub.f32 %v490, %v499
    %v502 = vmul.f32 %v500, 1.442695
    %v503 = vpow.pop %v502
    %v504 = vmul.f32 %v501, 1.442695
    %v505 = vpow.pop %v504
    %507 = vset.pattern.permute.xlu0 0
    %508 = vperm.xlu0 %507, %v498
    %v509 = vpop.permute.xlu0 %508
    %512 = vset.pattern.permute.xlu0 0
    %513 = vperm.xlu0 %512, %v499
    %v514 = vpop.permute.xlu0 %513
    %v516 = vsub.f32 %v487, %v509
    %v517 = vsub.f32 %v488, %v514
    %v518 = vmul.f32 %v516, 1.442695
    %v519 = vpow.pop %v518
    %v520 = vmul.f32 %v517, 1.442695
    %v521 = vpow.pop %v520
    %v522 = vld [vmem:[#allocation4] sm:$0xff]
    %v523 = vld [vmem:[#allocation4 + $0x8] sm:$0xff]
    %v524 = vmul.f32 %v503, %v522
    %v525 = vmul.f32 %v505, %v523
    %v526 = vsel %vm491, %v519, 0.0
    %527 = vadd.xlane.f32.xlu0 %v526
    %v528 = vpop.xlane.xlu0 %527
    %v529 = vsel %vm491, %v521, 0.0
    %530 = vadd.xlane.f32.xlu0 %v529
    %v531 = vpop.xlane.xlu0 %530
    %v532 = vadd.f32 %v524, %v528
    %v533 = vadd.f32 %v525, %v531
    %vm534 = vcmask 7168
    %535 = vst.msk [vmem:[#allocation4] sm:$0xff] %vm534, %v532
    %536 = vst.msk [vmem:[#allocation4 + $0x8] sm:$0xff] %vm534, %v533
    %v537 = vld [vmem:[#allocation5] sm:$0xff]
    %v538 = vld [vmem:[#allocation5 + $0x8] sm:$0xff]
    %540 = vset.pattern.permute.xlu0 0
    %541 = vperm.xlu0 %540, %v503
    %v542 = vpop.permute.xlu0 %541
    %545 = vset.pattern.permute.xlu0 0
    %546 = vperm.xlu0 %545, %v505
    %v547 = vpop.permute.xlu0 %546
    %v549 = vmul.f32 %v542, %v537
    %v550 = vmul.f32 %v547, %v538
    %v551 = vpack.c.bf16 %v519, %v519
    %v552 = vpack.c.bf16 %v521, %v521
    %v554 = vsel %vm491, %v551, 0
    %vm556 = vcmask 1043456
    %v558 = vsel %vm556, %v403, 0
    %560 = vmatprep.subr.bf16.mxu0 0
    %561 = vmatpush1.bf16.msra.mxu0 0
    %562 = vmatprep.subr.bf16.mxu0 0
    %563 = vmatpush1.bf16.msra.mxu0 0
    %564 = vmatprep.subr.bf16.mxu0 0
    %565 = vmatpush1.bf16.msra.mxu0 0
    %566 = vmatprep.subr.bf16.mxu0 0
    %567 = vmatpush1.bf16.msra.mxu0 0
    %568 = vmatprep.subr.bf16.mxu0 0
    %569 = vmatpush1.bf16.msra.mxu0 0
    %570 = vmatprep.subr.bf16.mxu0 0
    %571 = vmatpush1.bf16.msra.mxu0 0
    %572 = vmatprep.subr.bf16.mxu0 0
    %573 = vmatpush1.bf16.msra.mxu0 0
    %574 = vmatprep.subr.bf16.mxu0 0
    %575 = vmatpush1.bf16.msra.mxu0 %v558
    %576 = vmatprep.subr.bf16.mxu0 0
    %577 = vmatpush2.bf16.msra.mxu0 0
    %578 = vmatprep.subr.bf16.mxu0 0
    %579 = vmatpush2.bf16.msra.mxu0 0
    %580 = vmatprep.subr.bf16.mxu0 0
    %581 = vmatpush2.bf16.msra.mxu0 0
    %582 = vmatprep.subr.bf16.mxu0 0
    %583 = vmatpush2.bf16.msra.mxu0 0
    %584 = vmatprep.subr.bf16.mxu0 0
    %585 = vmatpush2.bf16.msra.mxu0 0
    %586 = vmatprep.subr.bf16.mxu0 0
    %587 = vmatpush2.bf16.msra.mxu0 0
    %588 = vmatprep.subr.bf16.mxu0 0
    %589 = vmatpush2.bf16.msra.mxu0 0
    %590 = vmatprep.subr.bf16.mxu0 0
    %591 = vmatpush2.bf16.msra.mxu0 0
    %592 = vmatprep.mubr.bf16.mxu0 0
    %593 = vmatmul.mubr.bf16.gmra.mxu0 %v554
    %v594 = vpop.f32.mrf.mxu0
    %v595 = vadd.f32 0.0, %v594
    %v596 = vpop.f32.mrf.mxu0
    %v597 = vpop.f32.mrf.mxu0
    %v598 = vpop.f32.mrf.mxu0
    %599 = vdwg.mxu0
    %v601 = vsel %vm491, %v552, 0
    %v604 = vsel %vm556, %v404, 0
    %606 = vmatprep.subr.bf16.mxu0 0
    %607 = vmatpush1.bf16.msra.mxu0 0
    %608 = vmatprep.subr.bf16.mxu0 0
    %609 = vmatpush1.bf16.msra.mxu0 0
    %610 = vmatprep.subr.bf16.mxu0 0
    %611 = vmatpush1.bf16.msra.mxu0 0
    %612 = vmatprep.subr.bf16.mxu0 0
    %613 = vmatpush1.bf16.msra.mxu0 0
    %614 = vmatprep.subr.bf16.mxu0 0
    %615 = vmatpush1.bf16.msra.mxu0 0
    %616 = vmatprep.subr.bf16.mxu0 0
    %617 = vmatpush1.bf16.msra.mxu0 0
    %618 = vmatprep.subr.bf16.mxu0 0
    %619 = vmatpush1.bf16.msra.mxu0 0
    %620 = vmatprep.subr.bf16.mxu0 0
    %621 = vmatpush1.bf16.msra.mxu0 %v604
    %622 = vmatprep.subr.bf16.mxu0 0
    %623 = vmatpush2.bf16.msra.mxu0 0
    %624 = vmatprep.subr.bf16.mxu0 0
    %625 = vmatpush2.bf16.msra.mxu0 0
    %626 = vmatprep.subr.bf16.mxu0 0
    %627 = vmatpush2.bf16.msra.mxu0 0
    %628 = vmatprep.subr.bf16.mxu0 0
    %629 = vmatpush2.bf16.msra.mxu0 0
    %630 = vmatprep.subr.bf16.mxu0 0
    %631 = vmatpush2.bf16.msra.mxu0 0
    %632 = vmatprep.subr.bf16.mxu0 0
    %633 = vmatpush2.bf16.msra.mxu0 0
    %634 = vmatprep.subr.bf16.mxu0 0
    %635 = vmatpush2.bf16.msra.mxu0 0
    %636 = vmatprep.subr.bf16.mxu0 0
    %637 = vmatpush2.bf16.msra.mxu0 0
    %638 = vmatprep.mubr.bf16.mxu0 0
    %639 = vmatmul.mubr.bf16.gmra.mxu0 %v601
    %v640 = vpop.f32.mrf.mxu0
    %v641 = vadd.f32 0.0, %v640
    %v642 = vpop.f32.mrf.mxu0
    %v643 = vpop.f32.mrf.mxu0
    %v644 = vpop.f32.mrf.mxu0
    %645 = vdwg.mxu0
    %v646 = vadd.f32 %v549, %v595
    %v647 = vadd.f32 %v550, %v641
    %648 = vst [vmem:[#allocation5] sm:$0xff] %v646
    %649 = vst [vmem:[#allocation5 + $0x8] sm:$0xff] %v647
    %650 = vst.msk [vmem:[#allocation3] sm:$0xff] %vm534, %v498
    %651 = vst.msk [vmem:[#allocation3 + $0x8] sm:$0xff] %vm534, %v499
    // Predicated region
    $region50: #{tpu_custom_call.1} parent=1 // pred_check
      %p652 = pneg %p93
    $region51: #{tpu_custom_call.1} parent=1 // pred_check_branch
      %654 = sbr.rel (%p652) target = $region53
    $region52: #{tpu_custom_call.1} parent=1 // pred_region
      %v655 = vld [vmem:[#allocation5] sm:$0xff]
      %v656 = vld [vmem:[#allocation5 + $0x8] sm:$0xff]
      %v657 = vld [vmem:[#allocation4] sm:$0xff]
      %v658 = vld [vmem:[#allocation4 + $0x8] sm:$0xff]
      %v659 = vrcp.pop %v657
      %v660 = vrcp.pop %v658
      %662 = vset.pattern.permute.xlu0 0
      %663 = vperm.xlu0 %662, %v659
      %v664 = vpop.permute.xlu0 %663
      %667 = vset.pattern.permute.xlu0 0
      %668 = vperm.xlu0 %667, %v660
      %v669 = vpop.permute.xlu0 %668
      %v671 = vmul.f32 %v655, %v664
      %v672 = vmul.f32 %v656, %v669
      %v673 = vpack.c.bf16 %v672, %v671
      %v674 = vld [vmem:[#allocation2] sm:$0xf]
      %v675 = vld [vmem:[#allocation2 + $0x4] sm:$0xf]
      %v676 = vld [vmem:[#allocation14] sm:$0xff]
      %v677 = vld [vmem:[#allocation14 + $0x8] sm:$0xff]
      %v678 = vld [vmem:[#allocation14 + $0x10] sm:$0xff]
      %v679 = vld [vmem:[#allocation14 + $0x18] sm:$0xff]
      %v680 = vld [vmem:[#allocation14 + $0x20] sm:$0xff]
      %v681 = vld [vmem:[#allocation14 + $0x28] sm:$0xff]
      %v682 = vld [vmem:[#allocation14 + $0x30] sm:$0xff]
      %v683 = vld [vmem:[#allocation14 + $0x38] sm:$0xff]
      %v684 = vld [vmem:[#allocation14 + $0x40] sm:$0xff]
      %v685 = vld [vmem:[#allocation14 + $0x48] sm:$0xff]
      %v686 = vld [vmem:[#allocation14 + $0x50] sm:$0xff]
      %v687 = vld [vmem:[#allocation14 + $0x58] sm:$0xff]
      %v688 = vld [vmem:[#allocation14 + $0x60] sm:$0xff]
      %v689 = vld [vmem:[#allocation14 + $0x68] sm:$0xff]
      %v690 = vld [vmem:[#allocation14 + $0x70] sm:$0xff]
      %v691 = vld [vmem:[#allocation14 + $0x78] sm:$0xff]
      %v692 = vld [vmem:[#allocation14 + $0x80] sm:$0xff]
      %v693 = vld [vmem:[#allocation14 + $0x88] sm:$0xff]
      %v694 = vld [vmem:[#allocation14 + $0x90] sm:$0xff]
      %v695 = vld [vmem:[#allocation14 + $0x98] sm:$0xff]
      %v696 = vld [vmem:[#allocation14 + $0xa0] sm:$0xff]
      %v697 = vld [vmem:[#allocation14 + $0xa8] sm:$0xff]
      %v698 = vld [vmem:[#allocation14 + $0xb0] sm:$0xff]
      %v699 = vld [vmem:[#allocation14 + $0xb8] sm:$0xff]
      %v700 = vld [vmem:[#allocation14 + $0xc0] sm:$0xff]
      %v701 = vld [vmem:[#allocation14 + $0xc8] sm:$0xff]
      %v702 = vld [vmem:[#allocation14 + $0xd0] sm:$0xff]
      %v703 = vld [vmem:[#allocation14 + $0xd8] sm:$0xff]
      %v704 = vld [vmem:[#allocation14 + $0xe0] sm:$0xff]
      %v705 = vld [vmem:[#allocation14 + $0xe8] sm:$0xff]
      %v706 = vld [vmem:[#allocation14 + $0xf0] sm:$0xff]
      %v707 = vld [vmem:[#allocation14 + $0xf8] sm:$0xff]
      %v710 = vunpack.c.l.b16 %v674
      %v711 = vunpack.c.l.b16 %v675
      %v712 = vpack.c.b16 %v711, %v710
      %v730 = vunpack.c.l.b16 %v692
      %v731 = vunpack.c.h.b16 %v692
      %v732 = vunpack.c.l.b16 %v693
      %v733 = vunpack.c.h.b16 %v693
      %v734 = vunpack.c.l.b16 %v694
      %v735 = vunpack.c.h.b16 %v694
      %v736 = vunpack.c.l.b16 %v695
      %v737 = vunpack.c.h.b16 %v695
      %v738 = vunpack.c.l.b16 %v696
      %v739 = vunpack.c.h.b16 %v696
      %v740 = vunpack.c.l.b16 %v697
      %v741 = vunpack.c.h.b16 %v697
      %v742 = vunpack.c.l.b16 %v698
      %v743 = vunpack.c.h.b16 %v698
      %v744 = vunpack.c.l.b16 %v699
      %v745 = vunpack.c.h.b16 %v699
      %v746 = vunpack.c.l.b16 %v700
      %v747 = vunpack.c.h.b16 %v700
      %v748 = vunpack.c.l.b16 %v701
      %v749 = vunpack.c.h.b16 %v701
      %v750 = vunpack.c.l.b16 %v702
      %v751 = vunpack.c.h.b16 %v702
      %v752 = vunpack.c.l.b16 %v703
      %v753 = vunpack.c.h.b16 %v703
      %v754 = vunpack.c.l.b16 %v704
      %v755 = vunpack.c.h.b16 %v704
      %v756 = vunpack.c.l.b16 %v705
      %v757 = vunpack.c.h.b16 %v705
      %v758 = vunpack.c.l.b16 %v706
      %v759 = vunpack.c.h.b16 %v706
      %v760 = vunpack.c.l.b16 %v707
      %v761 = vunpack.c.h.b16 %v707
      %v762 = vpack.c.b16 %v732, %v730
      %v763 = vpack.c.b16 %v733, %v731
      %v764 = vpack.c.b16 %v736, %v734
      %v765 = vpack.c.b16 %v737, %v735
      %v766 = vpack.c.b16 %v740, %v738
      %v767 = vpack.c.b16 %v741, %v739
      %v768 = vpack.c.b16 %v744, %v742
      %v769 = vpack.c.b16 %v745, %v743
      %v770 = vpack.c.b16 %v748, %v746
      %v771 = vpack.c.b16 %v749, %v747
      %v772 = vpack.c.b16 %v752, %v750
      %v773 = vpack.c.b16 %v753, %v751
      %v774 = vpack.c.b16 %v756, %v754
      %v775 = vpack.c.b16 %v757, %v755
      %v776 = vpack.c.b16 %v760, %v758
      %v777 = vpack.c.b16 %v761, %v759
      %794 = vmatprep.subr.bf16.mxu0 %v777
      %795 = vmatpush1.bf16.msra.mxu0 %v776
      %796 = vmatprep.subr.bf16.mxu0 %v775
      %797 = vmatpush1.bf16.msra.mxu0 %v774
      %798 = vmatprep.subr.bf16.mxu0 %v773
      %799 = vmatpush1.bf16.msra.mxu0 %v772
      %800 = vmatprep.subr.bf16.mxu0 %v771
      %801 = vmatpush1.bf16.msra.mxu0 %v770
      %802 = vmatprep.subr.bf16.mxu0 %v769
      %803 = vmatpush1.bf16.msra.mxu0 %v768
      %804 = vmatprep.subr.bf16.mxu0 %v767
      %805 = vmatpush1.bf16.msra.mxu0 %v766
      %806 = vmatprep.subr.bf16.mxu0 %v765
      %807 = vmatpush1.bf16.msra.mxu0 %v764
      %808 = vmatprep.subr.bf16.mxu0 %v763
      %809 = vmatpush1.bf16.msra.mxu0 %v762
      %810 = vmatprep.subr.bf16.mxu0 0
      %811 = vmatpush2.bf16.msra.mxu0 0
      %812 = vmatprep.subr.bf16.mxu0 0
      %813 = vmatpush2.bf16.msra.mxu0 0
      %814 = vmatprep.subr.bf16.mxu0 0
      %815 = vmatpush2.bf16.msra.mxu0 0
      %816 = vmatprep.subr.bf16.mxu0 0
      %817 = vmatpush2.bf16.msra.mxu0 0
      %818 = vmatprep.subr.bf16.mxu0 0
      %819 = vmatpush2.bf16.msra.mxu0 0
      %820 = vmatprep.subr.bf16.mxu0 0
      %821 = vmatpush2.bf16.msra.mxu0 0
      %822 = vmatprep.subr.bf16.mxu0 0
      %823 = vmatpush2.bf16.msra.mxu0 0
      %824 = vmatprep.subr.bf16.mxu0 0
      %825 = vmatpush2.bf16.msra.mxu0 0
      %826 = vmatprep.mubr.bf16.mxu0 0
      %827 = vmatmul.mubr.bf16.gmra.mxu0 %v712
      %v828 = vpop.f32.mrf.mxu0
      %v829 = vadd.f32 0.0, %v828
      %v830 = vpop.f32.mrf.mxu0
      %v831 = vadd.f32 0.0, %v830
      %v832 = vpop.f32.mrf.mxu0
      %v833 = vadd.f32 0.0, %v832
      %v834 = vpop.f32.mrf.mxu0
      %v835 = vadd.f32 0.0, %v834
      %836 = vdwg.mxu0
      %v853 = vunpack.c.l.b16 %v676
      %v854 = vunpack.c.h.b16 %v676
      %v855 = vunpack.c.l.b16 %v677
      %v856 = vunpack.c.h.b16 %v677
      %v857 = vunpack.c.l.b16 %v678
      %v858 = vunpack.c.h.b16 %v678
      %v859 = vunpack.c.l.b16 %v679
      %v860 = vunpack.c.h.b16 %v679
      %v861 = vunpack.c.l.b16 %v680
      %v862 = vunpack.c.h.b16 %v680
      %v863 = vunpack.c.l.b16 %v681
      %v864 = vunpack.c.h.b16 %v681
      %v865 = vunpack.c.l.b16 %v682
      %v866 = vunpack.c.h.b16 %v682
      %v867 = vunpack.c.l.b16 %v683
      %v868 = vunpack.c.h.b16 %v683
      %v869 = vunpack.c.l.b16 %v684
      %v870 = vunpack.c.h.b16 %v684
      %v871 = vunpack.c.l.b16 %v685
      %v872 = vunpack.c.h.b16 %v685
      %v873 = vunpack.c.l.b16 %v686
      %v874 = vunpack.c.h.b16 %v686
      %v875 = vunpack.c.l.b16 %v687
      %v876 = vunpack.c.h.b16 %v687
      %v877 = vunpack.c.l.b16 %v688
      %v878 = vunpack.c.h.b16 %v688
      %v879 = vunpack.c.l.b16 %v689
      %v880 = vunpack.c.h.b16 %v689
      %v881 = vunpack.c.l.b16 %v690
      %v882 = vunpack.c.h.b16 %v690
      %v883 = vunpack.c.l.b16 %v691
      %v884 = vunpack.c.h.b16 %v691
      %v885 = vpack.c.b16 %v855, %v853
      %v886 = vpack.c.b16 %v856, %v854
      %v887 = vpack.c.b16 %v859, %v857
      %v888 = vpack.c.b16 %v860, %v858
      %v889 = vpack.c.b16 %v863, %v861
      %v890 = vpack.c.b16 %v864, %v862
      %v891 = vpack.c.b16 %v867, %v865
      %v892 = vpack.c.b16 %v868, %v866
      %v893 = vpack.c.b16 %v871, %v869
      %v894 = vpack.c.b16 %v872, %v870
      %v895 = vpack.c.b16 %v875, %v873
      %v896 = vpack.c.b16 %v876, %v874
      %v897 = vpack.c.b16 %v879, %v877
      %v898 = vpack.c.b16 %v880, %v878
      %v899 = vpack.c.b16 %v883, %v881
      %v900 = vpack.c.b16 %v884, %v882
      %917 = vmatprep.subr.bf16.mxu0 %v900
      %918 = vmatpush1.bf16.msra.mxu0 %v899
      %919 = vmatprep.subr.bf16.mxu0 %v898
      %920 = vmatpush1.bf16.msra.mxu0 %v897
      %921 = vmatprep.subr.bf16.mxu0 %v896
      %922 = vmatpush1.bf16.msra.mxu0 %v895
      %923 = vmatprep.subr.bf16.mxu0 %v894
      %924 = vmatpush1.bf16.msra.mxu0 %v893
      %925 = vmatprep.subr.bf16.mxu0 %v892
      %926 = vmatpush1.bf16.msra.mxu0 %v891
      %927 = vmatprep.subr.bf16.mxu0 %v890
      %928 = vmatpush1.bf16.msra.mxu0 %v889
      %929 = vmatprep.subr.bf16.mxu0 %v888
      %930 = vmatpush1.bf16.msra.mxu0 %v887
      %931 = vmatprep.subr.bf16.mxu0 %v886
      %932 = vmatpush1.bf16.msra.mxu0 %v885
      %933 = vmatprep.subr.bf16.mxu0 0
      %934 = vmatpush2.bf16.msra.mxu0 0
      %935 = vmatprep.subr.bf16.mxu0 0
      %936 = vmatpush2.bf16.msra.mxu0 0
      %937 = vmatprep.subr.bf16.mxu0 0
      %938 = vmatpush2.bf16.msra.mxu0 0
      %939 = vmatprep.subr.bf16.mxu0 0
      %940 = vmatpush2.bf16.msra.mxu0 0
      %941 = vmatprep.subr.bf16.mxu0 0
      %942 = vmatpush2.bf16.msra.mxu0 0
      %943 = vmatprep.subr.bf16.mxu0 0
      %944 = vmatpush2.bf16.msra.mxu0 0
      %945 = vmatprep.subr.bf16.mxu0 0
      %946 = vmatpush2.bf16.msra.mxu0 0
      %947 = vmatprep.subr.bf16.mxu0 0
      %948 = vmatpush2.bf16.msra.mxu0 0
      %949 = vmatprep.mubr.bf16.mxu0 0
      %950 = vmatmul.mubr.bf16.gmra.mxu0 %v673
      %v951 = vpop.f32.mrf.mxu0
      %v952 = vadd.f32 %v829, %v951
      %v953 = vpop.f32.mrf.mxu0
      %v954 = vadd.f32 %v831, %v953
      %v955 = vpop.f32.mrf.mxu0
      %v956 = vadd.f32 %v833, %v955
      %v957 = vpop.f32.mrf.mxu0
      %v958 = vadd.f32 %v835, %v957
      %959 = vdwg.mxu0
      %v960 = vld [vmem:[%s5 + $0x3] sm:$0x1]
      %v961 = vlaneseq
      %v962 = vshrl.u32 %v961, 7
      %v963 = vsub.s32 0, %v962
      %v964 = vrot.slane %v960, %v963
      %v965 = vadd.f32 %v952, %v964
      %v966 = vadd.f32 %v956, %v964
      %v967 = vld [vmem:[%s5 + $0x4] sm:$0x1]
      %v968 = vlaneseq
      %v969 = vshrl.u32 %v968, 7
      %v970 = vsub.s32 0, %v969
      %v971 = vrot.slane %v967, %v970
      %v972 = vadd.f32 %v954, %v971
      %v973 = vadd.f32 %v958, %v971
      %v974 = vxor.u32 %v972, 2147483648
      %v975 = vxor.u32 %v973, 2147483648
      %v976 = vmul.f32 %v974, 1.442695
      %v977 = vpow.pop %v976
      %v978 = vmul.f32 %v975, 1.442695
      %v979 = vpow.pop %v978
      %v980 = vadd.f32 %v977, 1.0
      %v981 = vadd.f32 %v979, 1.0
      %v982 = vrcp.pop %v980
      %v983 = vmul.f32 1.0, %v982
      %v984 = vrcp.pop %v981
      %v985 = vmul.f32 1.0, %v984
      %v986 = vmul.f32 %v965, %v983
      %v987 = vmul.f32 %v966, %v985
      %988 = vadd.xlane.f32.xlu0 %v986
      %v989 = vpop.xlane.xlu0 %988
      %990 = vadd.xlane.f32.xlu0 %v987
      %v991 = vpop.xlane.xlu0 %990
      %v992 = vmul.f32 %v989, 0.03125
      %v993 = vmul.f32 %v991, 0.03125
      %v994 = vlaneseq
      %v995 = vand.u32 %v994, 127
      %vm996 = vcmp.lt.s32.totalorder %v995, 32
      %v997 = vsub.f32 %v986, %v992
      %v998 = vsub.f32 %v987, %v993
      %v999 = vsel %vm996, %v997, 0.0
      %v1000 = vsel %vm996, %v998, 0.0
      %v1001 = vmul.f32 %v999, %v999
      %v1002 = vmul.f32 %v1000, %v1000
      %1003 = vadd.xlane.f32.xlu0 %v1001
      %v1004 = vpop.xlane.xlu0 %1003
      %1005 = vadd.xlane.f32.xlu0 %v1002
      %v1006 = vpop.xlane.xlu0 %1005
      %v1007 = vmul.f32 %v1004, 0.03125
      %v1008 = vmul.f32 %v1006, 0.03125
      %v1009 = vadd.f32 %v1007, 1e-05
      %v1010 = vadd.f32 %v1008, 1e-05
      %v1011 = vrsqrt.pop %v1009
      %v1012 = vrsqrt.pop %v1010
      %v1013 = vmul.f32 %v999, %v1011
      %v1014 = vmul.f32 %v1000, %v1012
      %v1015 = vld [vmem:[%s5 + $0x5] sm:$0x1]
      %v1016 = vlaneseq
      %v1017 = vshrl.u32 %v1016, 7
      %v1018 = vsub.s32 0, %v1017
      %v1019 = vrot.slane %v1015, %v1018
      %v1020 = vmul.f32 %v1013, %v1019
      %v1021 = vmul.f32 %v1014, %v1019
      %v1022 = vld [vmem:[%s5 + $0x6] sm:$0x1]
      %v1023 = vlaneseq
      %v1024 = vshrl.u32 %v1023, 7
      %v1025 = vsub.s32 0, %v1024
      %v1026 = vrot.slane %v1022, %v1025
      %v1027 = vadd.f32 %v1020, %v1026
      %v1028 = vadd.f32 %v1021, %v1026
      %v1029 = vmax.f32 %v1027, 0.0
      %v1030 = vmax.f32 %v1028, 0.0
      %1031 = vst [vmem:[#allocation15] sm:$0xff] %v1029
      %1032 = vst [vmem:[#allocation15 + $0x8] sm:$0xff] %v1030
    $region53: #{tpu_custom_call.1} parent=1 // pred_fallthru
      _
    // Predicated region
    $region54: #{tpu_custom_call.1} parent=1 // pred_check
      _
    $region55: #{tpu_custom_call.1} parent=1 // pred_check_branch
      %1034 = sbr.rel (0) target = $region57
    $region56: #{tpu_custom_call.1} parent=1 // pred_region
      %s1036 = ssub.s32 256, 256
      %1037 = vsyncadd [#allocation8], %s1036
      %s1038 = sshll.u32 [#allocation15], 4
      %s1039 = int_to_ptr.vmem [resolvable:$true] %s1038
      %1044 = dma.vmem_to_hbm [thread:$0]  %s1039, 256, %s6, [#allocation8], 128, 128, 8
    $region57: #{tpu_custom_call.1} parent=1 // pred_fallthru
      _
    // Predicated region
    $region58: #{tpu_custom_call.1} parent=1 // pred_check
      _
    $region59: #{tpu_custom_call.1} parent=1 // pred_check_branch
      %1046 = sbr.rel (0) target = $region61
    $region60: #{tpu_custom_call.1} parent=1 // pred_region
      %1047 = dma.done [#allocation8], 256
    $region61: #{tpu_custom_call.1} parent=1 // pred_fallthru
      _
    %1048 = vsyncpa [#allocation7], 1
    %1049 = vsyncpa [#allocation10], 1
    %1050 = vsyncpa [#allocation13], 1
    %1051 = vsyncpa [#allocation8], 1

// kernel: tpu_custom_call.1
$region0: #{tpu_custom_call.1}
  #allocation0 [shape = 'u32[]', space=smem, size = 0x4, offset = 0x4, fixed_abs, tag = 'smem constant byte address 0x4 - core index']
  #allocation1 [shape = 'u32[144,128]{1,0:T(1,128)}', space=vmem, size = 0x12000, scoped, tag = 'internal scratch']
  #allocation2 [shape = 'bf16[2,8,128]{2,1,0:T(8,128)(2,1)}', space=vmem, size = 0x1000, scoped, tag = 'scratch operand']
  #allocation3 [shape = 'f32[2,8,1]{2,1,0:T(8,128)}', space=vmem, size = 0x2000, scoped, tag = 'scratch operand']
  #allocation4 [shape = 'f32[2,8,1]{2,1,0:T(8,128)}', space=vmem, size = 0x2000, scoped, tag = 'scratch operand']
  #allocation5 [shape = 'f32[2,8,128]{2,1,0:T(8,128)}', space=vmem, size = 0x2000, scoped, tag = 'scratch operand']
  %s0 = inlined_call_operand.hbm [shape: f32[2,8,128], index: 0, kind: input, shape index: {}]
  %s1 = inlined_call_operand.hbm [shape: f32[2,8,128], index: 1, kind: input, shape index: {}]
  %s2 = inlined_call_operand.hbm [shape: bf16[128,128], index: 2, kind: input, shape index: {}]
  %s3 = inlined_call_operand.hbm [shape: bf16[128,256], index: 3, kind: input, shape index: {}]
  %s4 = inlined_call_operand.hbm [shape: bf16[256,256], index: 4, kind: input, shape index: {}]
  %s5 = inlined_call_operand.vmem [shape: f32[8,128], index: 5, kind: input, shape index: {}]
  %s6 = inlined_call_operand.hbm [shape: f32[2,8,128], index: 6, kind: output, shape index: {}]
  %s7 = sld [smem:[#allocation0]]
  $region62: #{tpu_custom_call.1} parent=0
    _
  %s9 = ssub.s32 1, %s7
  %s10 = scalar_select 0, %s9, %s7
  $region1: #{tpu_custom_call.1} parent=0
    #allocation6 [shape = 'u8[8192]{0}', space=vmem, size = 0x2000, scoped, tag = 'input window, operand 0, single buffered']
    #allocation7 [shape = 's32[1]{0}', space=sflag, size = 0x4, scoped, tag = 'scoped memory for tpu_custom_call.1']
    #allocation8 [shape = 's32[1]{0}', space=sflag, size = 0x4, scoped, tag = 'scoped memory for tpu_custom_call.1']
    #allocation9 [shape = 'u8[8192]{0}', space=vmem, size = 0x2000, scoped, tag = 'input window, operand 1, single buffered']
    #allocation10 [shape = 's32[1]{0}', space=sflag, size = 0x4, scoped, tag = 'scoped memory for tpu_custom_call.1']
    #allocation11 [shape = 'u8[32768]{0}', space=vmem, size = 0x8000, scoped, tag = 'input window, operand 2, single buffered']
    #allocation12 [shape = 'u8[65536]{0}', space=vmem, size = 0x10000, scoped, tag = 'input window, operand 3, single buffered']
    #allocation13 [shape = 's32[1]{0}', space=sflag, size = 0x4, scoped, tag = 'scoped memory for tpu_custom_call.1']
    #allocation14 [shape = 'u8[131072]{0}', space=vmem, size = 0x20000, scoped, tag = 'input window, operand 4, single buffered']
    #allocation15 [shape = 'u8[8192]{0}', space=vmem, size = 0x2000, scoped, tag = 'output window, operand 0, single buffered']
    %11 = vsyncpa [#allocation7], 0
    %12 = vsyncpa [#allocation10], 0
    %13 = vsyncpa [#allocation13], 0
    %14 = vsyncpa [#allocation8], 0
    // Predicated region
    $region2: #{tpu_custom_call.1} parent=1 // pred_check
      _
    $region3: #{tpu_custom_call.1} parent=1 // pred_check_branch
      %16 = sbr.rel (0) target = $region5
    $region4: #{tpu_custom_call.1} parent=1 // pred_region
      %s18 = ssub.s32 256, 256
      %19 = vsyncadd [#allocation7], %s18
      %s20 = sshll.u32 [#allocation6], 4
      %s21 = int_to_ptr.vmem [resolvable:$true] %s20
      %26 = dma.hbm_to_vmem [thread:$0]  %s0, 256, %s21, [#allocation7], 128, 128, 8
    $region5: #{tpu_custom_call.1} parent=1 // pred_fallthru
      _
    // Predicated region
    $region6: #{tpu_custom_call.1} parent=1 // pred_check
      _
    $region7: #{tpu_custom_call.1} parent=1 // pred_check_branch
      %28 = sbr.rel (0) target = $region9
    $region8: #{tpu_custom_call.1} parent=1 // pred_region
      %s30 = ssub.s32 256, 256
      %31 = vsyncadd [#allocation10], %s30
      %s32 = sshll.u32 [#allocation9], 4
      %s33 = int_to_ptr.vmem [resolvable:$true] %s32
      %38 = dma.hbm_to_vmem [thread:$0]  %s1, 256, %s33, [#allocation10], 128, 128, 8
    $region9: #{tpu_custom_call.1} parent=1 // pred_fallthru
      _
    // Predicated region
    $region10: #{tpu_custom_call.1} parent=1 // pred_check
      _
    $region11: #{tpu_custom_call.1} parent=1 // pred_check_branch
      %40 = sbr.rel (0) target = $region13
    $region12: #{tpu_custom_call.1} parent=1 // pred_region
      %s42 = ssub.s32 1024, 1024
      %43 = vsyncadd [#allocation10], %s42
      %s44 = sshll.u32 [#allocation11], 4
      %s45 = int_to_ptr.vmem [resolvable:$true] %s44
      %50 = dma.hbm_to_vmem [thread:$0]  %s2, 1024, %s45, [#allocation10], 64, 64, 4
    $region13: #{tpu_custom_call.1} parent=1 // pred_fallthru
      _
    // Predicated region
    $region14: #{tpu_custom_call.1} parent=1 // pred_check
      _
    $region15: #{tpu_custom_call.1} parent=1 // pred_check_branch
      %52 = sbr.rel (0) target = $region17
    $region16: #{tpu_custom_call.1} parent=1 // pred_region
      %s54 = ssub.s32 2048, 2048
      %55 = vsyncadd [#allocation13], %s54
      %s56 = sshll.u32 [#allocation12], 4
      %s57 = int_to_ptr.vmem [resolvable:$true] %s56
      %62 = dma.hbm_to_vmem [thread:$0]  %s3, 2048, %s57, [#allocation13], 128, 128, 8
    $region17: #{tpu_custom_call.1} parent=1 // pred_fallthru
      _
    // Predicated region
    $region18: #{tpu_custom_call.1} parent=1 // pred_check
      _
    $region19: #{tpu_custom_call.1} parent=1 // pred_check_branch
      %64 = sbr.rel (0) target = $region21
    $region20: #{tpu_custom_call.1} parent=1 // pred_region
      %s66 = ssub.s32 4096, 4096
      %67 = vsyncadd [#allocation13], %s66
      %s68 = sshll.u32 [#allocation14], 4
      %s69 = int_to_ptr.vmem [resolvable:$true] %s68
      %74 = dma.hbm_to_vmem [thread:$0]  %s4, 4096, %s69, [#allocation13], 128, 128, 8
    $region21: #{tpu_custom_call.1} parent=1 // pred_fallthru
      _
    // Predicated region
    $region22: #{tpu_custom_call.1} parent=1 // pred_check
      _
    $region23: #{tpu_custom_call.1} parent=1 // pred_check_branch
      %76 = sbr.rel (0) target = $region25
    $region24: #{tpu_custom_call.1} parent=1 // pred_region
      _
    $region25: #{tpu_custom_call.1} parent=1 // pred_fallthru
      _
    // Predicated region
    $region26: #{tpu_custom_call.1} parent=1 // pred_check
      _
    $region27: #{tpu_custom_call.1} parent=1 // pred_check_branch
      %78 = sbr.rel (0) target = $region29
    $region28: #{tpu_custom_call.1} parent=1 // pred_region
      %79 = dma.done [#allocation7], 256
    $region29: #{tpu_custom_call.1} parent=1 // pred_fallthru
      _
    // Predicated region
    $region30: #{tpu_custom_call.1} parent=1 // pred_check
      _
    $region31: #{tpu_custom_call.1} parent=1 // pred_check_branch
      %81 = sbr.rel (0) target = $region33
    $region32: #{tpu_custom_call.1} parent=1 // pred_region
      %82 = dma.done [#allocation10], 256
    $region33: #{tpu_custom_call.1} parent=1 // pred_fallthru
      _
    // Predicated region
    $region34: #{tpu_custom_call.1} parent=1 // pred_check
      _
    $region35: #{tpu_custom_call.1} parent=1 // pred_check_branch
      %84 = sbr.rel (0) target = $region37
    $region36: #{tpu_custom_call.1} parent=1 // pred_region
      %85 = dma.done [#allocation10], 1024
    $region37: #{tpu_custom_call.1} parent=1 // pred_fallthru
      _
    // Predicated region
    $region38: #{tpu_custom_call.1} parent=1 // pred_check
      _
    $region39: #{tpu_custom_call.1} parent=1 // pred_check_branch
      %87 = sbr.rel (0) target = $region41
    $region40: #{tpu_custom_call.1} parent=1 // pred_region
      %88 = dma.done [#allocation13], 2048
    $region41: #{tpu_custom_call.1} parent=1 // pred_fallthru
      _
    // Predicated region
    $region42: #{tpu_custom_call.1} parent=1 // pred_check
      _
    $region43: #{tpu_custom_call.1} parent=1 // pred_check_branch
      %90 = sbr.rel (0) target = $region45
    $region44: #{tpu_custom_call.1} parent=1 // pred_region
      %91 = dma.done [#allocation13], 4096
    $region45: #{tpu_custom_call.1} parent=1 // pred_fallthru
      _
    %p93 = scmp.eq.s32.totalorder 0, 0
    // Predicated region
    $region46: #{tpu_custom_call.1} parent=1 // pred_check
      %p94 = pneg %p93
    $region47: #{tpu_custom_call.1} parent=1 // pred_check_branch
      %96 = sbr.rel (%p94) target = $region49
    $region48: #{tpu_custom_call.1} parent=1 // pred_region
      %v97 = vld [vmem:[#allocation6] sm:$0xff]
      %v98 = vld [vmem:[#allocation6 + $0x8] sm:$0xff]
      %v99 = vpack.c.bf16 %v97, %v97
      %v100 = vpack.c.bf16 %v98, %v98
      %v101 = vld [vmem:[#allocation11] sm:$0xf]
      %v102 = vld [vmem:[#allocation11 + $0x4] sm:$0xf]
      %v103 = vld [vmem:[#allocation11 + $0x8] sm:$0xf]
      %v104 = vld [vmem:[#allocation11 + $0xc] sm:$0xf]
      %v105 = vld [vmem:[#allocation11 + $0x10] sm:$0xf]
      %v106 = vld [vmem:[#allocation11 + $0x14] sm:$0xf]
      %v107 = vld [vmem:[#allocation11 + $0x18] sm:$0xf]
      %v108 = vld [vmem:[#allocation11 + $0x1c] sm:$0xf]
      %v109 = vld [vmem:[#allocation11 + $0x20] sm:$0xf]
      %v110 = vld [vmem:[#allocation11 + $0x24] sm:$0xf]
      %v111 = vld [vmem:[#allocation11 + $0x28] sm:$0xf]
      %v112 = vld [vmem:[#allocation11 + $0x2c] sm:$0xf]
      %v113 = vld [vmem:[#allocation11 + $0x30] sm:$0xf]
      %v114 = vld [vmem:[#allocation11 + $0x34] sm:$0xf]
      %v115 = vld [vmem:[#allocation11 + $0x38] sm:$0xf]
      %v116 = vld [vmem:[#allocation11 + $0x3c] sm:$0xf]
      %v117 = vld [vmem:[%s5] sm:$0x1]
      %v118 = vlaneseq
      %v119 = vshrl.u32 %v118, 7
      %v120 = vsub.s32 0, %v119
      %v121 = vrot.slane %v117, %v120
      %v124 = vunpack.c.l.b16 %v99
      %v125 = vunpack.c.l.b16 %v100
      %v126 = vpack.c.b16 %v125, %v124
      %v144 = vunpack.c.l.b16 %v101
      %v145 = vunpack.c.l.b16 %v102
      %v146 = vunpack.c.l.b16 %v103
      %v147 = vunpack.c.l.b16 %v104
      %v148 = vunpack.c.l.b16 %v105
      %v149 = vunpack.c.l.b16 %v106
      %v150 = vunpack.c.l.b16 %v107
      %v151 = vunpack.c.l.b16 %v108
      %v152 = vunpack.c.l.b16 %v109
      %v153 = vunpack.c.l.b16 %v110
      %v154 = vunpack.c.l.b16 %v111
      %v155 = vunpack.c.l.b16 %v112
      %v156 = vunpack.c.l.b16 %v113
      %v157 = vunpack.c.l.b16 %v114
      %v158 = vunpack.c.l.b16 %v115
      %v159 = vunpack.c.l.b16 %v116
      %v160 = vpack.c.b16 %v145, %v144
      %v161 = vpack.c.b16 %v147, %v146
      %v162 = vpack.c.b16 %v149, %v148
      %v163 = vpack.c.b16 %v151, %v150
      %v164 = vpack.c.b16 %v153, %v152
      %v165 = vpack.c.b16 %v155, %v154
      %v166 = vpack.c.b16 %v157, %v156
      %v167 = vpack.c.b16 %v159, %v158
      %176 = vmatprep.subr.bf16.mxu0 0
      %177 = vmatpush1.bf16.msra.mxu0 %v167
      %178 = vmatprep.subr.bf16.mxu0 0
      %179 = vmatpush1.bf16.msra.mxu0 %v166
      %180 = vmatprep.subr.bf16.mxu0 0
      %181 = vmatpush1.bf16.msra.mxu0 %v165
      %182 = vmatprep.subr.bf16.mxu0 0
      %183 = vmatpush1.bf16.msra.mxu0 %v164
      %184 = vmatprep.subr.bf16.mxu0 0
      %185 = vmatpush1.bf16.msra.mxu0 %v163
      %186 = vmatprep.subr.bf16.mxu0 0
      %187 = vmatpush1.bf16.msra.mxu0 %v162
      %188 = vmatprep.subr.bf16.mxu0 0
      %189 = vmatpush1.bf16.msra.mxu0 %v161
      %190 = vmatprep.subr.bf16.mxu0 0
      %191 = vmatpush1.bf16.msra.mxu0 %v160
      %192 = vmatprep.subr.bf16.mxu0 0
      %193 = vmatpush2.bf16.msra.mxu0 0
      %194 = vmatprep.subr.bf16.mxu0 0
      %195 = vmatpush2.bf16.msra.mxu0 0
      %196 = vmatprep.subr.bf16.mxu0 0
      %197 = vmatpush2.bf16.msra.mxu0 0
      %198 = vmatprep.subr.bf16.mxu0 0
      %199 = vmatpush2.bf16.msra.mxu0 0
      %200 = vmatprep.subr.bf16.mxu0 0
      %201 = vmatpush2.bf16.msra.mxu0 0
      %202 = vmatprep.subr.bf16.mxu0 0
      %203 = vmatpush2.bf16.msra.mxu0 0
      %204 = vmatprep.subr.bf16.mxu0 0
      %205 = vmatpush2.bf16.msra.mxu0 0
      %206 = vmatprep.subr.bf16.mxu0 0
      %207 = vmatpush2.bf16.msra.mxu0 0
      %208 = vmatprep.mubr.bf16.mxu0 0
      %209 = vmatmul.mubr.bf16.gmra.mxu0 %v126
      %v210 = vpop.f32.mrf.mxu0
      %v211 = vadd.f32 %v121, %v210
      %v212 = vpop.f32.mrf.mxu0
      %v213 = vpop.f32.mrf.mxu0
      %v214 = vadd.f32 %v121, %v213
      %v215 = vpop.f32.mrf.mxu0
      %216 = vdwg.mxu0
      %v217 = vpack.c.bf16 %v211, %v211
      %v218 = vpack.c.bf16 %v214, %v214
      %219 = vst [vmem:[#allocation2] sm:$0xf] %v217
      %220 = vst [vmem:[#allocation2 + $0x4] sm:$0xf] %v218
      %vm221 = vcmask 7168
      %222 = vst.msk [vmem:[#allocation3] sm:$0xff] %vm221, -inf
      %223 = vst.msk [vmem:[#allocation3 + $0x8] sm:$0xff] %vm221, -inf
      %224 = vst.msk [vmem:[#allocation4] sm:$0xff] %vm221, 0.0
      %225 = vst.msk [vmem:[#allocation4 + $0x8] sm:$0xff] %vm221, 0.0
      %226 = vst [vmem:[#allocation5] sm:$0xff] 0.0
      %227 = vst [vmem:[#allocation5 + $0x8] sm:$0xff] 0.0
    $region49: #{tpu_custom_call.1} parent=1 // pred_fallthru
      _
    %v228 = vld [vmem:[#allocation9] sm:$0xff]
    %v229 = vld [vmem:[#allocation9 + $0x8] sm:$0xff]
    %v230 = vpack.c.bf16 %v228, %v228
    %v231 = vpack.c.bf16 %v229, %v229
    %v232 = vld [vmem:[#allocation12] sm:$0xff]
    %v233 = vld [vmem:[#allocation12 + $0x8] sm:$0xff]
    %v234 = vld [vmem:[#allocation12 + $0x10] sm:$0xff]
    %v235 = vld [vmem:[#allocation12 + $0x18] sm:$0xff]
    %v236 = vld [vmem:[#allocation12 + $0x20] sm:$0xff]
    %v237 = vld [vmem:[#allocation12 + $0x28] sm:$0xff]
    %v238 = vld [vmem:[#allocation12 + $0x30] sm:$0xff]
    %v239 = vld [vmem:[#allocation12 + $0x38] sm:$0xff]
    %v240 = vld [vmem:[#allocation12 + $0x40] sm:$0xff]
    %v241 = vld [vmem:[#allocation12 + $0x48] sm:$0xff]
    %v242 = vld [vmem:[#allocation12 + $0x50] sm:$0xff]
    %v243 = vld [vmem:[#allocation12 + $0x58] sm:$0xff]
    %v244 = vld [vmem:[#allocation12 + $0x60] sm:$0xff]
    %v245 = vld [vmem:[#allocation12 + $0x68] sm:$0xff]
    %v246 = vld [vmem:[#allocation12 + $0x70] sm:$0xff]
    %v247 = vld [vmem:[#allocation12 + $0x78] sm:$0xff]
    %v250 = vunpack.c.l.b16 %v230
    %v251 = vunpack.c.l.b16 %v231
    %v252 = vpack.c.b16 %v251, %v250
    %v270 = vunpack.c.l.b16 %v232
    %v271 = vunpack.c.h.b16 %v232
    %v272 = vunpack.c.l.b16 %v233
    %v273 = vunpack.c.h.b16 %v233
    %v274 = vunpack.c.l.b16 %v234
    %v275 = vunpack.c.h.b16 %v234
    %v276 = vunpack.c.l.b16 %v235
    %v277 = vunpack.c.h.b16 %v235
    %v278 = vunpack.c.l.b16 %v236
    %v279 = vunpack.c.h.b16 %v236
    %v280 = vunpack.c.l.b16 %v237
    %v281 = vunpack.c.h.b16 %v237
    %v282 = vunpack.c.l.b16 %v238
    %v283 = vunpack.c.h.b16 %v238
    %v284 = vunpack.c.l.b16 %v239
    %v285 = vunpack.c.h.b16 %v239
    %v286 = vunpack.c.l.b16 %v240
    %v287 = vunpack.c.h.b16 %v240
    %v288 = vunpack.c.l.b16 %v241
    %v289 = vunpack.c.h.b16 %v241
    %v290 = vunpack.c.l.b16 %v242
    %v291 = vunpack.c.h.b16 %v242
    %v292 = vunpack.c.l.b16 %v243
    %v293 = vunpack.c.h.b16 %v243
    %v294 = vunpack.c.l.b16 %v244
    %v295 = vunpack.c.h.b16 %v244
    %v296 = vunpack.c.l.b16 %v245
    %v297 = vunpack.c.h.b16 %v245
    %v298 = vunpack.c.l.b16 %v246
    %v299 = vunpack.c.h.b16 %v246
    %v300 = vunpack.c.l.b16 %v247
    %v301 = vunpack.c.h.b16 %v247
    %v302 = vpack.c.b16 %v272, %v270
    %v303 = vpack.c.b16 %v273, %v271
    %v304 = vpack.c.b16 %v276, %v274
    %v305 = vpack.c.b16 %v277, %v275
    %v306 = vpack.c.b16 %v280, %v278
    %v307 = vpack.c.b16 %v281, %v279
    %v308 = vpack.c.b16 %v284, %v282
    %v309 = vpack.c.b16 %v285, %v283
    %v310 = vpack.c.b16 %v288, %v286
    %v311 = vpack.c.b16 %v289, %v287
    %v312 = vpack.c.b16 %v292, %v290
    %v313 = vpack.c.b16 %v293, %v291
    %v314 = vpack.c.b16 %v296, %v294
    %v315 = vpack.c.b16 %v297, %v295
    %v316 = vpack.c.b16 %v300, %v298
    %v317 = vpack.c.b16 %v301, %v299
    %334 = vmatprep.subr.bf16.mxu0 %v317
    %335 = vmatpush1.bf16.msra.mxu0 %v316
    %336 = vmatprep.subr.bf16.mxu0 %v315
    %337 = vmatpush1.bf16.msra.mxu0 %v314
    %338 = vmatprep.subr.bf16.mxu0 %v313
    %339 = vmatpush1.bf16.msra.mxu0 %v312
    %340 = vmatprep.subr.bf16.mxu0 %v311
    %341 = vmatpush1.bf16.msra.mxu0 %v310
    %342 = vmatprep.subr.bf16.mxu0 %v309
    %343 = vmatpush1.bf16.msra.mxu0 %v308
    %344 = vmatprep.subr.bf16.mxu0 %v307
    %345 = vmatpush1.bf16.msra.mxu0 %v306
    %346 = vmatprep.subr.bf16.mxu0 %v305
    %347 = vmatpush1.bf16.msra.mxu0 %v304
    %348 = vmatprep.subr.bf16.mxu0 %v303
    %349 = vmatpush1.bf16.msra.mxu0 %v302
    %350 = vmatprep.subr.bf16.mxu0 0
    %351 = vmatpush2.bf16.msra.mxu0 0
    %352 = vmatprep.subr.bf16.mxu0 0
    %353 = vmatpush2.bf16.msra.mxu0 0
    %354 = vmatprep.subr.bf16.mxu0 0
    %355 = vmatpush2.bf16.msra.mxu0 0
    %356 = vmatprep.subr.bf16.mxu0 0
    %357 = vmatpush2.bf16.msra.mxu0 0
    %358 = vmatprep.subr.bf16.mxu0 0
    %359 = vmatpush2.bf16.msra.mxu0 0
    %360 = vmatprep.subr.bf16.mxu0 0
    %361 = vmatpush2.bf16.msra.mxu0 0
    %362 = vmatprep.subr.bf16.mxu0 0
    %363 = vmatpush2.bf16.msra.mxu0 0
    %364 = vmatprep.subr.bf16.mxu0 0
    %365 = vmatpush2.bf16.msra.mxu0 0
    %366 = vmatprep.mubr.bf16.mxu0 0
    %367 = vmatmul.mubr.bf16.gmra.mxu0 %v252
    %v368 = vpop.f32.mrf.mxu0
    %v369 = vadd.f32 0.0, %v368
    %v370 = vpop.f32.mrf.mxu0
    %v371 = vadd.f32 0.0, %v370
    %v372 = vpop.f32.mrf.mxu0
    %v373 = vadd.f32 0.0, %v372
    %v374 = vpop.f32.mrf.mxu0
    %v375 = vadd.f32 0.0, %v374
    %376 = vdwg.mxu0
    %v377 = vld [vmem:[%s5 + $0x1] sm:$0x1]
    %v378 = vlaneseq
    %v379 = vshrl.u32 %v378, 7
    %v380 = vsub.s32 0, %v379
    %v381 = vrot.slane %v377, %v380
    %v382 = vadd.f32 %v369, %v381
    %v383 = vadd.f32 %v373, %v381
    %v384 = vpack.c.bf16 %v383, %v382
    %v386 = vunpack.c.l.b16 %v384
    %v387 = vunpack.c.h.b16 %v384
    %v388 = vpack.c.b16 %v386, %v386
    %v389 = vpack.c.b16 %v387, %v387
    %v392 = vld [vmem:[%s5 + $0x2] sm:$0x1]
    %v393 = vlaneseq
    %v394 = vshrl.u32 %v393, 7
    %v395 = vsub.s32 0, %v394
    %v396 = vrot.slane %v392, %v395
    %v397 = vadd.f32 %v371, %v396
    %v398 = vadd.f32 %v375, %v396
    %v399 = vpack.c.bf16 %v398, %v397
    %v401 = vunpack.c.l.b16 %v399
    %v402 = vunpack.c.h.b16 %v399
    %v403 = vpack.c.b16 %v401, %v401
    %v404 = vpack.c.b16 %v402, %v402
    %v405 = vld [vmem:[#allocation2] sm:$0xf]
    %v406 = vld [vmem:[#allocation2 + $0x4] sm:$0xf]
    %407 = vmatprep.subr.bf16.mxu0 0
    %408 = vmatpush1.bf16.xpose.msra.mxu0 0
    %409 = vmatprep.subr.bf16.mxu0 0
    %410 = vmatpush1.bf16.xpose.msra.mxu0 0
    %411 = vmatprep.subr.bf16.mxu0 0
    %412 = vmatpush1.bf16.xpose.msra.mxu0 0
    %413 = vmatprep.subr.bf16.mxu0 0
    %414 = vmatpush1.bf16.xpose.msra.mxu0 0
    %415 = vmatprep.subr.bf16.mxu0 0
    %416 = vmatpush1.bf16.xpose.msra.mxu0 0
    %417 = vmatprep.subr.bf16.mxu0 0
    %418 = vmatpush1.bf16.xpose.msra.mxu0 0
    %419 = vmatprep.subr.bf16.mxu0 0
    %420 = vmatpush1.bf16.xpose.msra.mxu0 0
    %421 = vmatprep.subr.bf16.mxu0 0
    %422 = vmatpush1.bf16.xpose.msra.mxu0 %v388
    %423 = vmatprep.subr.bf16.mxu0 0
    %424 = vmatpush2.bf16.xpose.msra.mxu0 0
    %425 = vmatprep.subr.bf16.mxu0 0
    %426 = vmatpush2.bf16.xpose.msra.mxu0 0
    %427 = vmatprep.subr.bf16.mxu0 0
    %428 = vmatpush2.bf16.xpose.msra.mxu0 0
    %429 = vmatprep.subr.bf16.mxu0 0
    %430 = vmatpush2.bf16.xpose.msra.mxu0 0
    %431 = vmatprep.subr.bf16.mxu0 0
    %432 = vmatpush2.bf16.xpose.msra.mxu0 0
    %433 = vmatprep.subr.bf16.mxu0 0
    %434 = vmatpush2.bf16.xpose.msra.mxu0 0
    %435 = vmatprep.subr.bf16.mxu0 0
    %436 = vmatpush2.bf16.xpose.msra.mxu0 0
    %437 = vmatprep.subr.bf16.mxu0 0
    %438 = vmatpush2.bf16.xpose.msra.mxu0 0
    %439 = vmatprep.mubr.bf16.mxu0 0
    %440 = vmatmul.mubr.bf16.gmra.mxu0 %v405
    %v441 = vpop.f32.mrf.mxu0
    %v442 = vadd.f32 0.0, %v441
    %v443 = vpop.f32.mrf.mxu0
    %v444 = vpop.f32.mrf.mxu0
    %v445 = vpop.f32.mrf.mxu0
    %446 = vdwg.mxu0
    %447 = vmatprep.subr.bf16.mxu0 0
    %448 = vmatpush1.bf16.xpose.msra.mxu0 0
    %449 = vmatprep.subr.bf16.mxu0 0
    %450 = vmatpush1.bf16.xpose.msra.mxu0 0
    %451 = vmatprep.subr.bf16.mxu0 0
    %452 = vmatpush1.bf16.xpose.msra.mxu0 0
    %453 = vmatprep.subr.bf16.mxu0 0
    %454 = vmatpush1.bf16.xpose.msra.mxu0 0
    %455 = vmatprep.subr.bf16.mxu0 0
    %456 = vmatpush1.bf16.xpose.msra.mxu0 0
    %457 = vmatprep.subr.bf16.mxu0 0
    %458 = vmatpush1.bf16.xpose.msra.mxu0 0
    %459 = vmatprep.subr.bf16.mxu0 0
    %460 = vmatpush1.bf16.xpose.msra.mxu0 0
    %461 = vmatprep.subr.bf16.mxu0 0
    %462 = vmatpush1.bf16.xpose.msra.mxu0 %v389
    %463 = vmatprep.subr.bf16.mxu0 0
    %464 = vmatpush2.bf16.xpose.msra.mxu0 0
    %465 = vmatprep.subr.bf16.mxu0 0
    %466 = vmatpush2.bf16.xpose.msra.mxu0 0
    %467 = vmatprep.subr.bf16.mxu0 0
    %468 = vmatpush2.bf16.xpose.msra.mxu0 0
    %469 = vmatprep.subr.bf16.mxu0 0
    %470 = vmatpush2.bf16.xpose.msra.mxu0 0
    %471 = vmatprep.subr.bf16.mxu0 0
    %472 = vmatpush2.bf16.xpose.msra.mxu0 0
    %473 = vmatprep.subr.bf16.mxu0 0
    %474 = vmatpush2.bf16.xpose.msra.mxu0 0
    %475 = vmatprep.subr.bf16.mxu0 0
    %476 = vmatpush2.bf16.xpose.msra.mxu0 0
    %477 = vmatprep.subr.bf16.mxu0 0
    %478 = vmatpush2.bf16.xpose.msra.mxu0 0
    %479 = vmatprep.mubr.bf16.mxu0 0
    %480 = vmatmul.mubr.bf16.gmra.mxu0 %v406
    %v481 = vpop.f32.mrf.mxu0
    %v482 = vadd.f32 0.0, %v481
    %v483 = vpop.f32.mrf.mxu0
    %v484 = vpop.f32.mrf.mxu0
    %v485 = vpop.f32.mrf.mxu0
    %486 = vdwg.mxu0
    %v487 = vmul.f32 %v442, 0.17677669
    %v488 = vmul.f32 %v482, 0.17677669
    %v489 = vld [vmem:[#allocation3] sm:$0xff]
    %v490 = vld [vmem:[#allocation3 + $0x8] sm:$0xff]
    %vm491 = vcmask 64512
    %v492 = vsel %vm491, %v487, -inf
    %493 = vmax.xlane.f32.xlu0 %v492
    %v494 = vpop.xlane.xlu0 %493
    %v495 = vsel %vm491, %v488, -inf
    %496 = vmax.xlane.f32.xlu0 %v495
    %v497 = vpop.xlane.xlu0 %496
    %v498 = vmax.f32 %v489, %v494
    %v499 = vmax.f32 %v490, %v497
    %v500 = vsub.f32 %v489, %v498
    %v501 = vsub.f32 %v490, %v499
    %v502 = vmul.f32 %v500, 1.442695
    %v503 = vpow.pop %v502
    %v504 = vmul.f32 %v501, 1.442695
    %v505 = vpow.pop %v504
    %507 = vset.pattern.permute.xlu0 0
    %508 = vperm.xlu0 %507, %v498
    %v509 = vpop.permute.xlu0 %508
    %512 = vset.pattern.permute.xlu0 0
    %513 = vperm.xlu0 %512, %v499
    %v514 = vpop.permute.xlu0 %513
    %v516 = vsub.f32 %v487, %v509
    %v517 = vsub.f32 %v488, %v514
    %v518 = vmul.f32 %v516, 1.442695
    %v519 = vpow.pop %v518
    %v520 = vmul.f32 %v517, 1.442695
    %v521 = vpow.pop %v520
    %v522 = vld [vmem:[#allocation4] sm:$0xff]
    %v523 = vld [vmem:[#allocation4 + $0x8] sm:$0xff]
    %v524 = vmul.f32 %v503, %v522
    %v525 = vmul.f32 %v505, %v523
    %v526 = vsel %vm491, %v519, 0.0
    %527 = vadd.xlane.f32.xlu0 %v526
    %v528 = vpop.xlane.xlu0 %527
    %v529 = vsel %vm491, %v521, 0.0
    %530 = vadd.xlane.f32.xlu0 %v529
    %v531 = vpop.xlane.xlu0 %530
    %v532 = vadd.f32 %v524, %v528
    %v533 = vadd.f32 %v525, %v531
    %vm534 = vcmask 7168
    %535 = vst.msk [vmem:[#allocation4] sm:$0xff] %vm534, %v532
    %536 = vst.msk [vmem:[#allocation4 + $0x8] sm:$0xff] %vm534, %v533
    %v537 = vld [vmem:[#allocation5] sm:$0xff]
    %v538 = vld [vmem:[#allocation5 + $0x8] sm:$0xff]
    %540 = vset.pattern.permute.xlu0 0
    %541 = vperm.xlu0 %540, %v503
    %v542 = vpop.permute.xlu0 %541
    %545 = vset.pattern.permute.xlu0 0
    %546 = vperm.xlu0 %545, %v505
    %v547 = vpop.permute.xlu0 %546
    %v549 = vmul.f32 %v542, %v537
    %v550 = vmul.f32 %v547, %v538
    %v551 = vpack.c.bf16 %v519, %v519
    %v552 = vpack.c.bf16 %v521, %v521
    %v554 = vsel %vm491, %v551, 0
    %vm556 = vcmask 1043456
    %v558 = vsel %vm556, %v403, 0
    %560 = vmatprep.subr.bf16.mxu0 0
    %561 = vmatpush1.bf16.msra.mxu0 0
    %562 = vmatprep.subr.bf16.mxu0 0
    %563 = vmatpush1.bf16.msra.mxu0 0
    %564 = vmatprep.subr.bf16.mxu0 0
    %565 = vmatpush1.bf16.msra.mxu0 0
    %566 = vmatprep.subr.bf16.mxu0 0
    %567 = vmatpush1.bf16.msra.mxu0 0
    %568 = vmatprep.subr.bf16.mxu0 0
    %569 = vmatpush1.bf16.msra.mxu0 0
    %570 = vmatprep.subr.bf16.mxu0 0
    %571 = vmatpush1.bf16.msra.mxu0 0
    %572 = vmatprep.subr.bf16.mxu0 0
    %573 = vmatpush1.bf16.msra.mxu0 0
    %574 = vmatprep.subr.bf16.mxu0 0
    %575 = vmatpush1.bf16.msra.mxu0 %v558
    %576 = vmatprep.subr.bf16.mxu0 0
    %577 = vmatpush2.bf16.msra.mxu0 0
    %578 = vmatprep.subr.bf16.mxu0 0
    %579 = vmatpush2.bf16.msra.mxu0 0
    %580 = vmatprep.subr.bf16.mxu0 0
    %581 = vmatpush2.bf16.msra.mxu0 0
    %582 = vmatprep.subr.bf16.mxu0 0
    %583 = vmatpush2.bf16.msra.mxu0 0
    %584 = vmatprep.subr.bf16.mxu0 0
    %585 = vmatpush2.bf16.msra.mxu0 0
    %586 = vmatprep.subr.bf16.mxu0 0
    %587 = vmatpush2.bf16.msra.mxu0 0
    %588 = vmatprep.subr.bf16.mxu0 0
    %589 = vmatpush2.bf16.msra.mxu0 0
    %590 = vmatprep.subr.bf16.mxu0 0
    %591 = vmatpush2.bf16.msra.mxu0 0
    %592 = vmatprep.mubr.bf16.mxu0 0
    %593 = vmatmul.mubr.bf16.gmra.mxu0 %v554
    %v594 = vpop.f32.mrf.mxu0
    %v595 = vadd.f32 0.0, %v594
    %v596 = vpop.f32.mrf.mxu0
    %v597 = vpop.f32.mrf.mxu0
    %v598 = vpop.f32.mrf.mxu0
    %599 = vdwg.mxu0
    %v601 = vsel %vm491, %v552, 0
    %v604 = vsel %vm556, %v404, 0
    %606 = vmatprep.subr.bf16.mxu0 0
    %607 = vmatpush1.bf16.msra.mxu0 0
    %608 = vmatprep.subr.bf16.mxu0 0
    %609 = vmatpush1.bf16.msra.mxu0 0
    %610 = vmatprep.subr.bf16.mxu0 0
    %611 = vmatpush1.bf16.msra.mxu0 0
    %612 = vmatprep.subr.bf16.mxu0 0
    %613 = vmatpush1.bf16.msra.mxu0 0
    %614 = vmatprep.subr.bf16.mxu0 0
    %615 = vmatpush1.bf16.msra.mxu0 0
    %616 = vmatprep.subr.bf16.mxu0 0
    %617 = vmatpush1.bf16.msra.mxu0 0
    %618 = vmatprep.subr.bf16.mxu0 0
    %619 = vmatpush1.bf16.msra.mxu0 0
    %620 = vmatprep.subr.bf16.mxu0 0
    %621 = vmatpush1.bf16.msra.mxu0 %v604
    %622 = vmatprep.subr.bf16.mxu0 0
    %623 = vmatpush2.bf16.msra.mxu0 0
    %624 = vmatprep.subr.bf16.mxu0 0
    %625 = vmatpush2.bf16.msra.mxu0 0
    %626 = vmatprep.subr.bf16.mxu0 0
    %627 = vmatpush2.bf16.msra.mxu0 0
    %628 = vmatprep.subr.bf16.mxu0 0
    %629 = vmatpush2.bf16.msra.mxu0 0
    %630 = vmatprep.subr.bf16.mxu0 0
    %631 = vmatpush2.bf16.msra.mxu0 0
    %632 = vmatprep.subr.bf16.mxu0 0
    %633 = vmatpush2.bf16.msra.mxu0 0
    %634 = vmatprep.subr.bf16.mxu0 0
    %635 = vmatpush2.bf16.msra.mxu0 0
    %636 = vmatprep.subr.bf16.mxu0 0
    %637 = vmatpush2.bf16.msra.mxu0 0
    %638 = vmatprep.mubr.bf16.mxu0 0
    %639 = vmatmul.mubr.bf16.gmra.mxu0 %v601
    %v640 = vpop.f32.mrf.mxu0
    %v641 = vadd.f32 0.0, %v640
    %v642 = vpop.f32.mrf.mxu0
    %v643 = vpop.f32.mrf.mxu0
    %v644 = vpop.f32.mrf.mxu0
    %645 = vdwg.mxu0
    %v646 = vadd.f32 %v549, %v595
    %v647 = vadd.f32 %v550, %v641
    %648 = vst [vmem:[#allocation5] sm:$0xff] %v646
    %649 = vst [vmem:[#allocation5 + $0x8] sm:$0xff] %v647
    %650 = vst.msk [vmem:[#allocation3] sm:$0xff] %vm534, %v498
    %651 = vst.msk [vmem:[#allocation3 + $0x8] sm:$0xff] %vm534, %v499
    // Predicated region
    $region50: #{tpu_custom_call.1} parent=1 // pred_check
      %p652 = pneg %p93
    $region51: #{tpu_custom_call.1} parent=1 // pred_check_branch
      %654 = sbr.rel (%p652) target = $region53
    $region52: #{tpu_custom_call.1} parent=1 // pred_region
      %v655 = vld [vmem:[#allocation5] sm:$0xff]
      %v656 = vld [vmem:[#allocation5 + $0x8] sm:$0xff]
      %v657 = vld [vmem:[#allocation4] sm:$0xff]
      %v658 = vld [vmem:[#allocation4 + $0x8] sm:$0xff]
      %v659 = vrcp.pop %v657
      %v660 = vrcp.pop %v658
      %662 = vset.pattern.permute.xlu0 0
      %663 = vperm.xlu0 %662, %v659
      %v664 = vpop.permute.xlu0 %663
      %667 = vset.pattern.permute.xlu0 0
      %668 = vperm.xlu0 %667, %v660
      %v669 = vpop.permute.xlu0 %668
      %v671 = vmul.f32 %v655, %v664
      %v672 = vmul.f32 %v656, %v669
      %v673 = vpack.c.bf16 %v672, %v671
      %v674 = vld [vmem:[#allocation2] sm:$0xf]
      %v675 = vld [vmem:[#allocation2 + $0x4] sm:$0xf]
      %v676 = vld [vmem:[#allocation14] sm:$0xff]
      %v677 = vld [vmem:[#allocation14 + $0x8] sm:$0xff]
      %v678 = vld [vmem:[#allocation14 + $0x10] sm:$0xff]
      %v679 = vld [vmem:[#allocation14 + $0x18] sm:$0xff]
      %v680 = vld [vmem:[#allocation14 + $0x20] sm:$0xff]
      %v681 = vld [vmem:[#allocation14 + $0x28] sm:$0xff]
      %v682 = vld [vmem:[#allocation14 + $0x30] sm:$0xff]
      %v683 = vld [vmem:[#allocation14 + $0x38] sm:$0xff]
      %v684 = vld [vmem:[#allocation14 + $0x40] sm:$0xff]
      %v685 = vld [vmem:[#allocation14 + $0x48] sm:$0xff]
      %v686 = vld [vmem:[#allocation14 + $0x50] sm:$0xff]
      %v687 = vld [vmem:[#allocation14 + $0x58] sm:$0xff]
      %v688 = vld [vmem:[#allocation14 + $0x60] sm:$0xff]
      %v689 = vld [vmem:[#allocation14 + $0x68] sm:$0xff]
      %v690 = vld [vmem:[#allocation14 + $0x70] sm:$0xff]
      %v691 = vld [vmem:[#allocation14 + $0x78] sm:$0xff]
      %v692 = vld [vmem:[#allocation14 + $0x80] sm:$0xff]
      %v693 = vld [vmem:[#allocation14 + $0x88] sm:$0xff]
      %v694 = vld [vmem:[#allocation14 + $0x90] sm:$0xff]
      %v695 = vld [vmem:[#allocation14 + $0x98] sm:$0xff]
      %v696 = vld [vmem:[#allocation14 + $0xa0] sm:$0xff]
      %v697 = vld [vmem:[#allocation14 + $0xa8] sm:$0xff]
      %v698 = vld [vmem:[#allocation14 + $0xb0] sm:$0xff]
      %v699 = vld [vmem:[#allocation14 + $0xb8] sm:$0xff]
      %v700 = vld [vmem:[#allocation14 + $0xc0] sm:$0xff]
      %v701 = vld [vmem:[#allocation14 + $0xc8] sm:$0xff]
      %v702 = vld [vmem:[#allocation14 + $0xd0] sm:$0xff]
      %v703 = vld [vmem:[#allocation14 + $0xd8] sm:$0xff]
      %v704 = vld [vmem:[#allocation14 + $0xe0] sm:$0xff]
      %v705 = vld [vmem:[#allocation14 + $0xe8] sm:$0xff]
      %v706 = vld [vmem:[#allocation14 + $0xf0] sm:$0xff]
      %v707 = vld [vmem:[#allocation14 + $0xf8] sm:$0xff]
      %v710 = vunpack.c.l.b16 %v674
      %v711 = vunpack.c.l.b16 %v675
      %v712 = vpack.c.b16 %v711, %v710
      %v730 = vunpack.c.l.b16 %v692
      %v731 = vunpack.c.h.b16 %v692
      %v732 = vunpack.c.l.b16 %v693
      %v733 = vunpack.c.h.b16 %v693
      %v734 = vunpack.c.l.b16 %v694
      %v735 = vunpack.c.h.b16 %v694
      %v736 = vunpack.c.l.b16 %v695
      %v737 = vunpack.c.h.b16 %v695
      %v738 = vunpack.c.l.b16 %v696
      %v739 = vunpack.c.h.b16 %v696
      %v740 = vunpack.c.l.b16 %v697
      %v741 = vunpack.c.h.b16 %v697
      %v742 = vunpack.c.l.b16 %v698
      %v743 = vunpack.c.h.b16 %v698
      %v744 = vunpack.c.l.b16 %v699
      %v745 = vunpack.c.h.b16 %v699
      %v746 = vunpack.c.l.b16 %v700
      %v747 = vunpack.c.h.b16 %v700
      %v748 = vunpack.c.l.b16 %v701
      %v749 = vunpack.c.h.b16 %v701
      %v750 = vunpack.c.l.b16 %v702
      %v751 = vunpack.c.h.b16 %v702
      %v752 = vunpack.c.l.b16 %v703
      %v753 = vunpack.c.h.b16 %v703
      %v754 = vunpack.c.l.b16 %v704
      %v755 = vunpack.c.h.b16 %v704
      %v756 = vunpack.c.l.b16 %v705
      %v757 = vunpack.c.h.b16 %v705
      %v758 = vunpack.c.l.b16 %v706
      %v759 = vunpack.c.h.b16 %v706
      %v760 = vunpack.c.l.b16 %v707
      %v761 = vunpack.c.h.b16 %v707
      %v762 = vpack.c.b16 %v732, %v730
      %v763 = vpack.c.b16 %v733, %v731
      %v764 = vpack.c.b16 %v736, %v734
      %v765 = vpack.c.b16 %v737, %v735
      %v766 = vpack.c.b16 %v740, %v738
      %v767 = vpack.c.b16 %v741, %v739
      %v768 = vpack.c.b16 %v744, %v742
      %v769 = vpack.c.b16 %v745, %v743
      %v770 = vpack.c.b16 %v748, %v746
      %v771 = vpack.c.b16 %v749, %v747
      %v772 = vpack.c.b16 %v752, %v750
      %v773 = vpack.c.b16 %v753, %v751
      %v774 = vpack.c.b16 %v756, %v754
      %v775 = vpack.c.b16 %v757, %v755
      %v776 = vpack.c.b16 %v760, %v758
      %v777 = vpack.c.b16 %v761, %v759
      %794 = vmatprep.subr.bf16.mxu0 %v777
      %795 = vmatpush1.bf16.msra.mxu0 %v776
      %796 = vmatprep.subr.bf16.mxu0 %v775
      %797 = vmatpush1.bf16.msra.mxu0 %v774
      %798 = vmatprep.subr.bf16.mxu0 %v773
      %799 = vmatpush1.bf16.msra.mxu0 %v772
      %800 = vmatprep.subr.bf16.mxu0 %v771
      %801 = vmatpush1.bf16.msra.mxu0 %v770
      %802 = vmatprep.subr.bf16.mxu0 %v769
      %803 = vmatpush1.bf16.msra.mxu0 %v768
      %804 = vmatprep.subr.bf16.mxu0 %v767
      %805 = vmatpush1.bf16.msra.mxu0 %v766
      %806 = vmatprep.subr.bf16.mxu0 %v765
      %807 = vmatpush1.bf16.msra.mxu0 %v764
      %808 = vmatprep.subr.bf16.mxu0 %v763
      %809 = vmatpush1.bf16.msra.mxu0 %v762
      %810 = vmatprep.subr.bf16.mxu0 0
      %811 = vmatpush2.bf16.msra.mxu0 0
      %812 = vmatprep.subr.bf16.mxu0 0
      %813 = vmatpush2.bf16.msra.mxu0 0
      %814 = vmatprep.subr.bf16.mxu0 0
      %815 = vmatpush2.bf16.msra.mxu0 0
      %816 = vmatprep.subr.bf16.mxu0 0
      %817 = vmatpush2.bf16.msra.mxu0 0
      %818 = vmatprep.subr.bf16.mxu0 0
      %819 = vmatpush2.bf16.msra.mxu0 0
      %820 = vmatprep.subr.bf16.mxu0 0
      %821 = vmatpush2.bf16.msra.mxu0 0
      %822 = vmatprep.subr.bf16.mxu0 0
      %823 = vmatpush2.bf16.msra.mxu0 0
      %824 = vmatprep.subr.bf16.mxu0 0
      %825 = vmatpush2.bf16.msra.mxu0 0
      %826 = vmatprep.mubr.bf16.mxu0 0
      %827 = vmatmul.mubr.bf16.gmra.mxu0 %v712
      %v828 = vpop.f32.mrf.mxu0
      %v829 = vadd.f32 0.0, %v828
      %v830 = vpop.f32.mrf.mxu0
      %v831 = vadd.f32 0.0, %v830
      %v832 = vpop.f32.mrf.mxu0
      %v833 = vadd.f32 0.0, %v832
      %v834 = vpop.f32.mrf.mxu0
      %v835 = vadd.f32 0.0, %v834
      %836 = vdwg.mxu0
      %v853 = vunpack.c.l.b16 %v676
      %v854 = vunpack.c.h.b16 %v676
      %v855 = vunpack.c.l.b16 %v677
      %v856 = vunpack.c.h.b16 %v677
      %v857 = vunpack.c.l.b16 %v678
      %v858 = vunpack.c.h.b16 %v678
      %v859 = vunpack.c.l.b16 %v679
      %v860 = vunpack.c.h.b16 %v679
      %v861 = vunpack.c.l.b16 %v680
      %v862 = vunpack.c.h.b16 %v680
      %v863 = vunpack.c.l.b16 %v681
      %v864 = vunpack.c.h.b16 %v681
      %v865 = vunpack.c.l.b16 %v682
      %v866 = vunpack.c.h.b16 %v682
      %v867 = vunpack.c.l.b16 %v683
      %v868 = vunpack.c.h.b16 %v683
      %v869 = vunpack.c.l.b16 %v684
      %v870 = vunpack.c.h.b16 %v684
      %v871 = vunpack.c.l.b16 %v685
      %v872 = vunpack.c.h.b16 %v685
      %v873 = vunpack.c.l.b16 %v686
      %v874 = vunpack.c.h.b16 %v686
      %v875 = vunpack.c.l.b16 %v687
      %v876 = vunpack.c.h.b16 %v687
      %v877 = vunpack.c.l.b16 %v688
      %v878 = vunpack.c.h.b16 %v688
      %v879 = vunpack.c.l.b16 %v689
      %v880 = vunpack.c.h.b16 %v689
      %v881 = vunpack.c.l.b16 %v690
      %v882 = vunpack.c.h.b16 %v690
      %v883 = vunpack.c.l.b16 %v691
      %v884 = vunpack.c.h.b16 %v691
      %v885 = vpack.c.b16 %v855, %v853
      %v886 = vpack.c.b16 %v856, %v854
      %v887 = vpack.c.b16 %v859, %v857
      %v888 = vpack.c.b16 %v860, %v858
      %v889 = vpack.c.b16 %v863, %v861
      %v890 = vpack.c.b16 %v864, %v862
      %v891 = vpack.c.b16 %v867, %v865
      %v892 = vpack.c.b16 %v868, %v866
      %v893 = vpack.c.b16 %v871, %v869
      %v894 = vpack.c.b16 %v872, %v870
      %v895 = vpack.c.b16 %v875, %v873
      %v896 = vpack.c.b16 %v876, %v874
      %v897 = vpack.c.b16 %v879, %v877
      %v898 = vpack.c.b16 %v880, %v878
      %v899 = vpack.c.b16 %v883, %v881
      %v900 = vpack.c.b16 %v884, %v882
      %917 = vmatprep.subr.bf16.mxu0 %v900
      %918 = vmatpush1.bf16.msra.mxu0 %v899
      %919 = vmatprep.subr.bf16.mxu0 %v898
      %920 = vmatpush1.bf16.msra.mxu0 %v897
      %921 = vmatprep.subr.bf16.mxu0 %v896
      %922 = vmatpush1.bf16.msra.mxu0 %v895
      %923 = vmatprep.subr.bf16.mxu0 %v894
      %924 = vmatpush1.bf16.msra.mxu0 %v893
      %925 = vmatprep.subr.bf16.mxu0 %v892
      %926 = vmatpush1.bf16.msra.mxu0 %v891
      %927 = vmatprep.subr.bf16.mxu0 %v890
      %928 = vmatpush1.bf16.msra.mxu0 %v889
      %929 = vmatprep.subr.bf16.mxu0 %v888
      %930 = vmatpush1.bf16.msra.mxu0 %v887
      %931 = vmatprep.subr.bf16.mxu0 %v886
      %932 = vmatpush1.bf16.msra.mxu0 %v885
      %933 = vmatprep.subr.bf16.mxu0 0
      %934 = vmatpush2.bf16.msra.mxu0 0
      %935 = vmatprep.subr.bf16.mxu0 0
      %936 = vmatpush2.bf16.msra.mxu0 0
      %937 = vmatprep.subr.bf16.mxu0 0
      %938 = vmatpush2.bf16.msra.mxu0 0
      %939 = vmatprep.subr.bf16.mxu0 0
      %940 = vmatpush2.bf16.msra.mxu0 0
      %941 = vmatprep.subr.bf16.mxu0 0
      %942 = vmatpush2.bf16.msra.mxu0 0
      %943 = vmatprep.subr.bf16.mxu0 0
      %944 = vmatpush2.bf16.msra.mxu0 0
      %945 = vmatprep.subr.bf16.mxu0 0
      %946 = vmatpush2.bf16.msra.mxu0 0
      %947 = vmatprep.subr.bf16.mxu0 0
      %948 = vmatpush2.bf16.msra.mxu0 0
      %949 = vmatprep.mubr.bf16.mxu0 0
      %950 = vmatmul.mubr.bf16.gmra.mxu0 %v673
      %v951 = vpop.f32.mrf.mxu0
      %v952 = vadd.f32 %v829, %v951
      %v953 = vpop.f32.mrf.mxu0
      %v954 = vadd.f32 %v831, %v953
      %v955 = vpop.f32.mrf.mxu0
      %v956 = vadd.f32 %v833, %v955
      %v957 = vpop.f32.mrf.mxu0
      %v958 = vadd.f32 %v835, %v957
      %959 = vdwg.mxu0
      %v960 = vld [vmem:[%s5 + $0x3] sm:$0x1]
      %v961 = vlaneseq
      %v962 = vshrl.u32 %v961, 7
      %v963 = vsub.s32 0, %v962
      %v964 = vrot.slane %v960, %v963
      %v965 = vadd.f32 %v952, %v964
      %v966 = vadd.f32 %v956, %v964
      %v967 = vld [vmem:[%s5 + $0x4] sm:$0x1]
      %v968 = vlaneseq
      %v969 = vshrl.u32 %v968, 7
      %v970 = vsub.s32 0, %v969
      %v971 = vrot.slane %v967, %v970
      %v972 = vadd.f32 %v954, %v971
      %v973 = vadd.f32 %v958, %v971
      %v974 = vxor.u32 %v972, 2147483648
      %v975 = vxor.u32 %v973, 2147483648
      %v976 = vmul.f32 %v974, 1.442695
      %v977 = vpow.pop %v976
      %v978 = vmul.f32 %v975, 1.442695
      %v979 = vpow.pop %v978
      %v980 = vadd.f32 %v977, 1.0
      %v981 = vadd.f32 %v979, 1.0
      %v982 = vrcp.pop %v980
      %v983 = vmul.f32 1.0, %v982
      %v984 = vrcp.pop %v981
      %v985 = vmul.f32 1.0, %v984
      %v986 = vmul.f32 %v965, %v983
      %v987 = vmul.f32 %v966, %v985
      %988 = vadd.xlane.f32.xlu0 %v986
      %v989 = vpop.xlane.xlu0 %988
      %990 = vadd.xlane.f32.xlu0 %v987
      %v991 = vpop.xlane.xlu0 %990
      %v992 = vmul.f32 %v989, 0.03125
      %v993 = vmul.f32 %v991, 0.03125
      %v994 = vlaneseq
      %v995 = vand.u32 %v994, 127
      %vm996 = vcmp.lt.s32.totalorder %v995, 32
      %v997 = vsub.f32 %v986, %v992
      %v998 = vsub.f32 %v987, %v993
      %v999 = vsel %vm996, %v997, 0.0
      %v1000 = vsel %vm996, %v998, 0.0
      %v1001 = vmul.f32 %v999, %v999
      %v1002 = vmul.f32 %v1000, %v1000
      %1003 = vadd.xlane.f32.xlu0 %v1001
      %v1004 = vpop.xlane.xlu0 %1003
      %1005 = vadd.xlane.f32.xlu0 %v1002
      %v1006 = vpop.xlane.xlu0 %1005
      %v1007 = vmul.f32 %v1004, 0.03125
      %v1008 = vmul.f32 %v1006, 0.03125
      %v1009 = vadd.f32 %v1007, 1e-05
      %v1010 = vadd.f32 %v1008, 1e-05
      %v1011 = vrsqrt.pop %v1009
      %v1012 = vrsqrt.pop %v1010
      %v1013 = vmul.f32 %v999, %v1011
      %v1014 = vmul.f32 %v1000, %v1012
      %v1015 = vld [vmem:[%s5 + $0x5] sm:$0x1]
      %v1016 = vlaneseq
      %v1017 = vshrl.u32 %v1016, 7
      %v1018 = vsub.s32 0, %v1017
      %v1019 = vrot.slane %v1015, %v1018
      %v1020 = vmul.f32 %v1013, %v1019
      %v1021 = vmul.f32 %v1014, %v1019
      %v1022 = vld [vmem:[%s5 + $0x6] sm:$0x1]
      %v1023 = vlaneseq
      %v1024 = vshrl.u32 %v1023, 7
      %v1025 = vsub.s32 0, %v1024
      %v1026 = vrot.slane %v1022, %v1025
      %v1027 = vadd.f32 %v1020, %v1026
      %v1028 = vadd.f32 %v1021, %v1026
      %v1029 = vmax.f32 %v1027, 0.0
      %v1030 = vmax.f32 %v1028, 0.0
      %1031 = vst [vmem:[#allocation15] sm:$0xff] %v1029
      %1032 = vst [vmem:[#allocation15 + $0x8] sm:$0xff] %v1030
    $region53: #{tpu_custom_call.1} parent=1 // pred_fallthru
      _
    // Predicated region
    $region54: #{tpu_custom_call.1} parent=1 // pred_check
      _
    $region55: #{tpu_custom_call.1} parent=1 // pred_check_branch
      %1034 = sbr.rel (0) target = $region57
    $region56: #{tpu_custom_call.1} parent=1 // pred_region
      %s1036 = ssub.s32 256, 256
      %1037 = vsyncadd [#allocation8], %s1036
      %s1038 = sshll.u32 [#allocation15], 4
      %s1039 = int_to_ptr.vmem [resolvable:$true] %s1038
      %1044 = dma.vmem_to_hbm [thread:$0]  %s1039, 256, %s6, [#allocation8], 128, 128, 8
    $region57: #{tpu_custom_call.1} parent=1 // pred_fallthru
      _
    // Predicated region
    $region58: #{tpu_custom_call.1} parent=1 // pred_check
      _
    $region59: #{tpu_custom_call.1} parent=1 // pred_check_branch
      %1046 = sbr.rel (0) target = $region61
    $region60: #{tpu_custom_call.1} parent=1 // pred_region
      %1047 = dma.done [#allocation8], 256
    $region61: #{tpu_custom_call.1} parent=1 // pred_fallthru
      _
    %1048 = vsyncpa [#allocation7], 1
    %1049 = vsyncpa [#allocation10], 1
    %1050 = vsyncpa [#allocation13], 1
    %1051 = vsyncpa [#allocation8], 1

</llo_original>
